<compile_context>
chip_gen: v7x
topology: tpu7x:2x2x1
jax: 0.10.0
libtpu: 0.0.40
codegen_flags: <defaults>
</compile_context>

<pallas_src>
import jax
import jax.numpy as jnp
from jax import lax
from jax.experimental import pallas as pl
from jax.experimental.pallas import tpu as pltpu


# ----------------------------- Pallas kernel --------------------------------
def _cnn_lstm_kernel(x_ref, w1c_ref, b1_ref, w2c_ref, b2_ref,
                     wih_ref, whh_ref, bl_ref, wlin_ref, blin_ref,
                     out_ref):
    x = x_ref[...]                               # (B, T, Cin) f32
    B, T, _ = x.shape
    C1 = w1c_ref.shape[-1]                       # 64
    H = whh_ref.shape[0]
    G = 4 * H
    S = T // 2                                   # MaxPool1d(2,2) output length

    def conv3_relu(h, wc_ref, b_ref):
        # h: (B, Ti, Ci); wc_ref: (3*Ci, Co)  (taps stacked tap-major).
        # Conv1d(kernel=3, padding=1) as ONE matmul: pad time once, take the
        # three shifted views as static slices, concat along channels.
        Bi, Ti, Ci = h.shape
        Co = wc_ref.shape[-1]
        z = jnp.zeros((Bi, 1, Ci), h.dtype)
        hp = jnp.concatenate([z, h, z], axis=1)                  # (B, Ti+2, Ci)
        stag = jnp.concatenate(
            [hp[:, 0:Ti, :],          # row t holds h[t-1]
             hp[:, 1:Ti + 1, :],      # row t holds h[t]
             hp[:, 2:Ti + 2, :]],     # row t holds h[t+1]
            axis=-1)                                             # (B, Ti, 3*Ci)
        y = (jnp.dot(stag.reshape(Bi * Ti, 3 * Ci), wc_ref[...],
                     preferred_element_type=jnp.float32)
             + b_ref[...])                                       # (1, Co) bcast
        return jnp.maximum(y, 0.0).reshape(Bi, Ti, Co)           # ReLU

    h1 = conv3_relu(x, w1c_ref, b1_ref)          # (B, T, 64)
    h2 = conv3_relu(h1, w2c_ref, b2_ref)         # (B, T, 64)

    # MaxPool1d(kernel=2, stride=2) over time (trailing element dropped if T
    # odd, matching PyTorch).  Dropout: identity (inference mode).
    p = jnp.max(h2[:, :2 * S, :].reshape(B, S, 2, C1), axis=2)   # (B, S, 64)

    # ---- LSTM input-side matmul hoisted out of the recurrence -------------
    # Transpose p to time-major FIRST so the single MXU matmul produces the
    # gate tensor already ordered (S, B, 4H); the per-step slice below is then
    # a static, contiguous-sublane read of a traced value (no VMEM scratch).
    p_tm = jnp.transpose(p, (1, 0, 2))                           # (S, B, 64)
    xg = (jnp.dot(p_tm.reshape(S * B, C1), wih_ref[...],
                  preferred_element_type=jnp.float32)
          + bl_ref[...]).reshape(S, B, G)                        # (S, B, 4H)

    whh = whh_ref[...]                                           # hoisted read

    # Gate columns were permuted in the wrapper to [i, f, o, g].
    # sigmoid/tanh run full-width on the (B, 4H) vreg (one EUP pass each);
    # only the bounded results are lane-sliced afterwards.
    h_t = jnp.zeros((B, H), jnp.float32)
    c_t = jnp.zeros((B, H), jnp.float32)
    for t in range(S):                          # static full unroll (S small)
        gates = xg[t] + jnp.dot(h_t, whh,
                                preferred_element_type=jnp.float32)   # (B, 4H)
        sig = jax.nn.sigmoid(gates)             # full-width EUP
        tnh = jnp.tanh(gates)                   # full-width EUP
        i_g = sig[:, 0:H]
        f_g = sig[:, H:2 * H]
        o_g = sig[:, 2 * H:3 * H]
        g_g = tnh[:, 3 * H:]
        c_t = f_g * c_t + i_g * g_g
        h_t = o_g * jnp.tanh(c_t)

    # Dropout on last hidden state: identity (eval mode), then Linear.
    out_ref[...] = (jnp.dot(h_t, wlin_ref[...],
                            preferred_element_type=jnp.float32)
                    + blin_ref[...])


# ------------------------------- wrapper -------------------------------------
def cnn_lstm_forward(x, params):
    w1, b1, w2, b2, wih, whh, bl, wlin, blin = params
    B, T, Cin = x.shape
    H = whh.shape[0]
    out_size = wlin.shape[1]
    S = T // 2
    assert S >= 1, "sequence too short for MaxPool1d(2,2) + LSTM"

    # Fuse the 3 conv taps into a single (3*Cin, Cout) weight (free, trace-time).
    w1c = w1.reshape(3 * w1.shape[1], w1.shape[2])
    w2c = w2.reshape(3 * w2.shape[1], w2.shape[2])

    # Permute LSTM gate columns from PyTorch order [i, f, g, o] to [i, f, o, g]
    # so the kernel applies sigmoid/tanh + slices to contiguous blocks.
    def reorder_gates(m):
        return jnp.concatenate(
            [m[..., :2 * H], m[..., 3 * H:4 * H], m[..., 2 * H:3 * H]], axis=-1)

    wih_r, whh_r, bl_r = reorder_gates(wih), reorder_gates(whh), reorder_gates(bl)

    def full(shape):
        n = len(shape)
        return pl.BlockSpec(shape, lambda i, n=n: (0,) * n)

    args = (x, w1c, b1, w2c, b2, wih_r, whh_r, bl_r, wlin, blin)
    in_specs = [full(a.shape) for a in args]

    # Advisory cost hint for XLA's scheduler around this latency-bound call.
    flops = int(2 * B * T * (3 * Cin * 64 + 3 * 64 * 64)
                + 2 * B * S * (64 * 4 * H + H * 4 * H)
                + 2 * B * H * out_size)
    transcendentals = int(B * S * 9 * H)        # sigmoid(4H)+tanh(4H)+tanh(H)
    bytes_accessed = int(4 * (sum(int(a.size) for a in args) + B * out_size))

    # grid=(1,) on purpose: at this size the kernel is serial-latency-bound in
    # the S-step LSTM chain; a per-batch grid would replay that chain per
    # program on single-TC chips.  For big batched deployments add a leading
    # "parallel" batch axis (v7x: 2 TCs) and re-derive tiles for 64 MiB VMEM.
    return pl.pallas_call(
        _cnn_lstm_kernel,
        out_shape=jax.ShapeDtypeStruct((B, out_size), jnp.float32),
        grid_spec=pltpu.PrefetchScalarGridSpec(
            num_scalar_prefetch=0,
            grid=(1,),
            in_specs=in_specs,
            out_specs=full((B, out_size)),
        ),
        compiler_params=pltpu.CompilerParams(
            dimension_semantics=("arbitrary",)),
        cost_estimate=pl.CostEstimate(flops=flops,
                                      transcendentals=transcendentals,
                                      bytes_accessed=bytes_accessed),
    )(*args)


# ---------------------- plain-JAX reference (same math) ----------------------
def reference_forward(x, params):
    # Uses the RAW (un-fused, PyTorch-gate-order) params, so it also validates
    # the wrapper-side weight fusion / gate permutation.
    w1, b1, w2, b2, wih, whh, bl, wlin, blin = params

    def conv3_relu(h, w, b):
        z = jnp.zeros_like(h[:, :1, :])
        h_m1 = jnp.concatenate([z, h[:, :-1, :]], axis=1)
        h_p1 = jnp.concatenate([h[:, 1:, :], z], axis=1)
        y = (jnp.einsum('btc,cd->btd', h_m1, w[0])
             + jnp.einsum('btc,cd->btd', h, w[1])
             + jnp.einsum('btc,cd->btd', h_p1, w[2]) + b)
        return jax.nn.relu(y)

    h1 = conv3_relu(x, w1, b1)
    h2 = conv3_relu(h1, w2, b2)
    B, T, C = h2.shape
    S = T // 2
    p = jnp.max(h2[:, :2 * S, :].reshape(B, S, 2, C), axis=2)
    H = whh.shape[0]
    h = jnp.zeros((B, H), jnp.float32)
    c = jnp.zeros((B, H), jnp.float32)
    for t in range(S):
        gates = p[:, t, :] @ wih + h @ whh + bl
        i_g = jax.nn.sigmoid(gates[:, :H])
        f_g = jax.nn.sigmoid(gates[:, H:2 * H])
        g_g = jnp.tanh(gates[:, 2 * H:3 * H])
        o_g = jax.nn.sigmoid(gates[:, 3 * H:])
        c = f_g * c + i_g * g_g
        h = o_g * jnp.tanh(c)
    return h @ wlin + blin


# ------------------------------ param init -----------------------------------
def init_params(key, input_size, hidden_size, output_size):
    ks = jax.random.split(key, 9)

    def rn(k, shape, scale):
        return (scale * jax.random.normal(k, shape)).astype(jnp.float32)

    # conv1: PyTorch weight (64, Cin, 3) stored here as (3, Cin, 64) = weight[:, :, k].T
    w1 = rn(ks[0], (3, input_size, 64), 0.3)
    b1 = rn(ks[1], (1, 64), 0.1)
    w2 = rn(ks[2], (3, 64, 64), 0.1)
    b2 = rn(ks[3], (1, 64), 0.1)
    # LSTM: weight_ih (4H, 64) -> (64, 4H); weight_hh (4H, H) -> (H, 4H); bias = b_ih + b_hh
    wih = rn(ks[4], (64, 4 * hidden_size), 0.1)
    whh = rn(ks[5], (hidden_size, 4 * hidden_size), 0.1)
    bl = rn(ks[6], (1, 4 * hidden_size), 0.1)
    # Linear: weight (Out, H) -> (H, Out)
    wlin = rn(ks[7], (hidden_size, output_size), 0.1)
    blin = rn(ks[8], (1, output_size), 0.1)
    return (w1, b1, w2, b2, wih, whh, bl, wlin, blin)


if __name__ == "__main__":
    B, T = 2, 16            # batch, sequence length (even -> exact MaxPool1d(2,2))
    input_size = 4          # features per timestep
    hidden_size = 32
    output_size = 8         # number of IMFs in the original script

    key = jax.random.PRNGKey(0)
    kx, kp = jax.random.split(key)
    x = jax.random.normal(kx, (B, T, input_size), dtype=jnp.float32)
    params = init_params(kp, input_size, hidden_size, output_size)

    out = cnn_lstm_forward(x, params)
    out = jax.block_until_ready(out)

    ref = reference_forward(x, params)
    assert out.shape == (B, output_size)
    assert jnp.allclose(out, ref, atol=1e-4, rtol=1e-4), "mismatch vs. JAX reference"

    # TODO(synk): nn.Dropout is identity here (inference mode); training-mode
    # dropout would need pltpu.prng_seed/prng_random_bits masks.
    print("KERNEL_OK")
</pallas_src>

<mosaic_0001>
module attributes {stable_mosaic.version = 11 : i64} {
  func.func @_cnn_lstm_kernel(%arg0: i32, %arg1: memref<2x16x4xf32, #tpu.memory_space<vmem>>, %arg2: memref<12x64xf32, #tpu.memory_space<vmem>>, %arg3: memref<1x64xf32, #tpu.memory_space<vmem>>, %arg4: memref<192x64xf32, #tpu.memory_space<vmem>>, %arg5: memref<1x64xf32, #tpu.memory_space<vmem>>, %arg6: memref<64x128xf32, #tpu.memory_space<vmem>>, %arg7: memref<32x128xf32, #tpu.memory_space<vmem>>, %arg8: memref<1x128xf32, #tpu.memory_space<vmem>>, %arg9: memref<32x8xf32, #tpu.memory_space<vmem>>, %arg10: memref<1x8xf32, #tpu.memory_space<vmem>>, %arg11: memref<2x8xf32, #tpu.memory_space<vmem>>) attributes {dimension_semantics = [#tpu.dimension_semantics<arbitrary>], iteration_bounds = array<i64: 1>, scalar_prefetch = 0 : i64, scratch_operands = 0 : i64, tpu.core_type = #tpu.core_type<tc>, window_params = [{pipeline_mode = #tpu.pipeline_mode<synchronous>, transform_indices = @transform_0, window_bounds = array<i64: 2, 16, 4>}, {pipeline_mode = #tpu.pipeline_mode<synchronous>, transform_indices = @transform_1, window_bounds = array<i64: 12, 64>}, {pipeline_mode = #tpu.pipeline_mode<synchronous>, transform_indices = @transform_2, window_bounds = array<i64: 1, 64>}, {pipeline_mode = #tpu.pipeline_mode<synchronous>, transform_indices = @transform_3, window_bounds = array<i64: 192, 64>}, {pipeline_mode = #tpu.pipeline_mode<synchronous>, transform_indices = @transform_4, window_bounds = array<i64: 1, 64>}, {pipeline_mode = #tpu.pipeline_mode<synchronous>, transform_indices = @transform_5, window_bounds = array<i64: 64, 128>}, {pipeline_mode = #tpu.pipeline_mode<synchronous>, transform_indices = @transform_6, window_bounds = array<i64: 32, 128>}, {pipeline_mode = #tpu.pipeline_mode<synchronous>, transform_indices = @transform_7, window_bounds = array<i64: 1, 128>}, {pipeline_mode = #tpu.pipeline_mode<synchronous>, transform_indices = @transform_8, window_bounds = array<i64: 32, 8>}, {pipeline_mode = #tpu.pipeline_mode<synchronous>, transform_indices = @transform_9, window_bounds = array<i64: 1, 8>}, {pipeline_mode = #tpu.pipeline_mode<synchronous>, transform_indices = @transform_10, window_bounds = array<i64: 2, 8>}]} {
    %c0 = arith.constant 0 : index
    %c0_0 = arith.constant 0 : index
    %c0_1 = arith.constant 0 : index
    %0 = vector.load %arg1[%c0, %c0_0, %c0_1] : memref<2x16x4xf32, #tpu.memory_space<vmem>>, vector<2x16x4xf32>
    %cst = arith.constant 0.000000e+00 : f32
    %1 = vector.broadcast %cst : f32 to vector<2x1x4xf32>
    %2 = tpu.concatenate %1, %0, %1 in 1 : vector<2x1x4xf32>, vector<2x16x4xf32>, vector<2x1x4xf32> -> vector<2x18x4xf32>
    %3 = vector.extract_strided_slice %2 {offsets = [0, 0, 0], sizes = [2, 16, 4], strides = [1, 1, 1]} : vector<2x18x4xf32> to vector<2x16x4xf32>
    %4 = vector.extract_strided_slice %2 {offsets = [0, 1, 0], sizes = [2, 16, 4], strides = [1, 1, 1]} : vector<2x18x4xf32> to vector<2x16x4xf32>
    %5 = vector.extract_strided_slice %2 {offsets = [0, 2, 0], sizes = [2, 16, 4], strides = [1, 1, 1]} : vector<2x18x4xf32> to vector<2x16x4xf32>
    %6 = tpu.concatenate %3, %4, %5 in 2 : vector<2x16x4xf32>, vector<2x16x4xf32>, vector<2x16x4xf32> -> vector<2x16x12xf32>
    %7 = vector.shape_cast %6 : vector<2x16x12xf32> to vector<32x12xf32>
    %c0_2 = arith.constant 0 : index
    %c0_3 = arith.constant 0 : index
    %8 = vector.load %arg2[%c0_2, %c0_3] : memref<12x64xf32, #tpu.memory_space<vmem>>, vector<12x64xf32>
    %cst_4 = arith.constant dense<0.000000e+00> : vector<32x64xf32>
    %9 = tpu.matmul %7, %8, %cst_4 {dimension_numbers = #tpu.dot_dimension_numbers<[1], [0], [0], [1], [0, 0, 1, 1], [], []>} : vector<32x12xf32>, vector<12x64xf32>, vector<32x64xf32> -> vector<32x64xf32>
    %c0_5 = arith.constant 0 : index
    %c0_6 = arith.constant 0 : index
    %10 = vector.load %arg3[%c0_5, %c0_6] : memref<1x64xf32, #tpu.memory_space<vmem>>, vector<1x64xf32>
    %11 = vector.broadcast %10 : vector<1x64xf32> to vector<32x64xf32>
    %12 = arith.addf %9, %11 : vector<32x64xf32>
    %cst_7 = arith.constant 0.000000e+00 : f32
    %13 = vector.broadcast %cst_7 : f32 to vector<32x64xf32>
    %14 = arith.maximumf %12, %13 : vector<32x64xf32>
    %15 = vector.shape_cast %14 : vector<32x64xf32> to vector<2x16x64xf32>
    %cst_8 = arith.constant 0.000000e+00 : f32
    %16 = vector.broadcast %cst_8 : f32 to vector<2x1x64xf32>
    %17 = tpu.concatenate %16, %15, %16 in 1 : vector<2x1x64xf32>, vector<2x16x64xf32>, vector<2x1x64xf32> -> vector<2x18x64xf32>
    %18 = vector.extract_strided_slice %17 {offsets = [0, 0, 0], sizes = [2, 16, 64], strides = [1, 1, 1]} : vector<2x18x64xf32> to vector<2x16x64xf32>
    %19 = vector.extract_strided_slice %17 {offsets = [0, 1, 0], sizes = [2, 16, 64], strides = [1, 1, 1]} : vector<2x18x64xf32> to vector<2x16x64xf32>
    %20 = vector.extract_strided_slice %17 {offsets = [0, 2, 0], sizes = [2, 16, 64], strides = [1, 1, 1]} : vector<2x18x64xf32> to vector<2x16x64xf32>
    %21 = tpu.concatenate %18, %19, %20 in 2 : vector<2x16x64xf32>, vector<2x16x64xf32>, vector<2x16x64xf32> -> vector<2x16x192xf32>
    %22 = vector.shape_cast %21 : vector<2x16x192xf32> to vector<32x192xf32>
    %c0_9 = arith.constant 0 : index
    %c0_10 = arith.constant 0 : index
    %23 = vector.load %arg4[%c0_9, %c0_10] : memref<192x64xf32, #tpu.memory_space<vmem>>, vector<192x64xf32>
    %cst_11 = arith.constant dense<0.000000e+00> : vector<32x64xf32>
    %24 = tpu.matmul %22, %23, %cst_11 {dimension_numbers = #tpu.dot_dimension_numbers<[1], [0], [0], [1], [0, 0, 1, 1], [], []>} : vector<32x192xf32>, vector<192x64xf32>, vector<32x64xf32> -> vector<32x64xf32>
    %c0_12 = arith.constant 0 : index
    %c0_13 = arith.constant 0 : index
    %25 = vector.load %arg5[%c0_12, %c0_13] : memref<1x64xf32, #tpu.memory_space<vmem>>, vector<1x64xf32>
    %26 = vector.broadcast %25 : vector<1x64xf32> to vector<32x64xf32>
    %27 = arith.addf %24, %26 : vector<32x64xf32>
    %cst_14 = arith.constant 0.000000e+00 : f32
    %28 = vector.broadcast %cst_14 : f32 to vector<32x64xf32>
    %29 = arith.maximumf %27, %28 : vector<32x64xf32>
    %30 = vector.shape_cast %29 : vector<32x64xf32> to vector<2x16x64xf32>
    %31 = vector.shape_cast %30 : vector<2x16x64xf32> to vector<2x8x2x64xf32>
    %cst_15 = arith.constant dense<0xFF800000> : vector<2x8x64xf32>
    %32 = vector.multi_reduction <maximumf>, %31, %cst_15 [2] : vector<2x8x2x64xf32> to vector<2x8x64xf32>
    %33 = tpu.transpose %32, [1, 0, 2] : vector<2x8x64xf32> -> vector<8x2x64xf32>
    %34 = vector.shape_cast %33 : vector<8x2x64xf32> to vector<16x64xf32>
    %c0_16 = arith.constant 0 : index
    %c0_17 = arith.constant 0 : index
    %35 = vector.load %arg6[%c0_16, %c0_17] : memref<64x128xf32, #tpu.memory_space<vmem>>, vector<64x128xf32>
    %cst_18 = arith.constant dense<0.000000e+00> : vector<16x128xf32>
    %36 = tpu.matmul %34, %35, %cst_18 {dimension_numbers = #tpu.dot_dimension_numbers<[1], [0], [0], [1], [0, 0, 1, 1], [], []>} : vector<16x64xf32>, vector<64x128xf32>, vector<16x128xf32> -> vector<16x128xf32>
    %c0_19 = arith.constant 0 : index
    %c0_20 = arith.constant 0 : index
    %37 = vector.load %arg8[%c0_19, %c0_20] : memref<1x128xf32, #tpu.memory_space<vmem>>, vector<1x128xf32>
    %38 = vector.broadcast %37 : vector<1x128xf32> to vector<16x128xf32>
    %39 = arith.addf %36, %38 : vector<16x128xf32>
    %40 = vector.shape_cast %39 : vector<16x128xf32> to vector<8x2x128xf32>
    %c0_21 = arith.constant 0 : index
    %c0_22 = arith.constant 0 : index
    %41 = vector.load %arg7[%c0_21, %c0_22] : memref<32x128xf32, #tpu.memory_space<vmem>>, vector<32x128xf32>
    %cst_23 = arith.constant 0.000000e+00 : f32
    %42 = vector.broadcast %cst_23 : f32 to vector<2x32xf32>
    %cst_24 = arith.constant 0.000000e+00 : f32
    %43 = vector.broadcast %cst_24 : f32 to vector<2x32xf32>
    %44 = vector.extract_strided_slice %40 {offsets = [0, 0, 0], sizes = [1, 2, 128], strides = [1, 1, 1]} : vector<8x2x128xf32> to vector<1x2x128xf32>
    %45 = vector.shape_cast %44 : vector<1x2x128xf32> to vector<2x128xf32>
    %cst_25 = arith.constant dense<0.000000e+00> : vector<2x128xf32>
    %46 = tpu.matmul %42, %41, %cst_25 {dimension_numbers = #tpu.dot_dimension_numbers<[1], [0], [0], [1], [0, 0, 1, 1], [], []>} : vector<2x32xf32>, vector<32x128xf32>, vector<2x128xf32> -> vector<2x128xf32>
    %47 = arith.addf %45, %46 : vector<2x128xf32>
    %48 = arith.negf %47 : vector<2x128xf32>
    %49 = math.exp %48 : vector<2x128xf32>
    %cst_26 = arith.constant 1.000000e+00 : f32
    %50 = vector.broadcast %cst_26 : f32 to vector<2x128xf32>
    %51 = arith.addf %50, %49 : vector<2x128xf32>
    %52 = arith.divf %50, %51 : vector<2x128xf32>
    %53 = math.tanh %47 : vector<2x128xf32>
    %54 = vector.extract_strided_slice %52 {offsets = [0, 0], sizes = [2, 32], strides = [1, 1]} : vector<2x128xf32> to vector<2x32xf32>
    %55 = vector.extract_strided_slice %52 {offsets = [0, 32], sizes = [2, 32], strides = [1, 1]} : vector<2x128xf32> to vector<2x32xf32>
    %56 = vector.extract_strided_slice %52 {offsets = [0, 64], sizes = [2, 32], strides = [1, 1]} : vector<2x128xf32> to vector<2x32xf32>
    %57 = vector.extract_strided_slice %53 {offsets = [0, 96], sizes = [2, 32], strides = [1, 1]} : vector<2x128xf32> to vector<2x32xf32>
    %58 = arith.mulf %55, %43 : vector<2x32xf32>
    %59 = arith.mulf %54, %57 : vector<2x32xf32>
    %60 = arith.addf %58, %59 : vector<2x32xf32>
    %61 = math.tanh %60 : vector<2x32xf32>
    %62 = arith.mulf %56, %61 : vector<2x32xf32>
    %63 = vector.extract_strided_slice %40 {offsets = [1, 0, 0], sizes = [1, 2, 128], strides = [1, 1, 1]} : vector<8x2x128xf32> to vector<1x2x128xf32>
    %64 = vector.shape_cast %63 : vector<1x2x128xf32> to vector<2x128xf32>
    %cst_27 = arith.constant dense<0.000000e+00> : vector<2x128xf32>
    %65 = tpu.matmul %62, %41, %cst_27 {dimension_numbers = #tpu.dot_dimension_numbers<[1], [0], [0], [1], [0, 0, 1, 1], [], []>} : vector<2x32xf32>, vector<32x128xf32>, vector<2x128xf32> -> vector<2x128xf32>
    %66 = arith.addf %64, %65 : vector<2x128xf32>
    %67 = arith.negf %66 : vector<2x128xf32>
    %68 = math.exp %67 : vector<2x128xf32>
    %cst_28 = arith.constant 1.000000e+00 : f32
    %69 = vector.broadcast %cst_28 : f32 to vector<2x128xf32>
    %70 = arith.addf %69, %68 : vector<2x128xf32>
    %71 = arith.divf %69, %70 : vector<2x128xf32>
    %72 = math.tanh %66 : vector<2x128xf32>
    %73 = vector.extract_strided_slice %71 {offsets = [0, 0], sizes = [2, 32], strides = [1, 1]} : vector<2x128xf32> to vector<2x32xf32>
    %74 = vector.extract_strided_slice %71 {offsets = [0, 32], sizes = [2, 32], strides = [1, 1]} : vector<2x128xf32> to vector<2x32xf32>
    %75 = vector.extract_strided_slice %71 {offsets = [0, 64], sizes = [2, 32], strides = [1, 1]} : vector<2x128xf32> to vector<2x32xf32>
    %76 = vector.extract_strided_slice %72 {offsets = [0, 96], sizes = [2, 32], strides = [1, 1]} : vector<2x128xf32> to vector<2x32xf32>
    %77 = arith.mulf %74, %60 : vector<2x32xf32>
    %78 = arith.mulf %73, %76 : vector<2x32xf32>
    %79 = arith.addf %77, %78 : vector<2x32xf32>
    %80 = math.tanh %79 : vector<2x32xf32>
    %81 = arith.mulf %75, %80 : vector<2x32xf32>
    %82 = vector.extract_strided_slice %40 {offsets = [2, 0, 0], sizes = [1, 2, 128], strides = [1, 1, 1]} : vector<8x2x128xf32> to vector<1x2x128xf32>
    %83 = vector.shape_cast %82 : vector<1x2x128xf32> to vector<2x128xf32>
    %cst_29 = arith.constant dense<0.000000e+00> : vector<2x128xf32>
    %84 = tpu.matmul %81, %41, %cst_29 {dimension_numbers = #tpu.dot_dimension_numbers<[1], [0], [0], [1], [0, 0, 1, 1], [], []>} : vector<2x32xf32>, vector<32x128xf32>, vector<2x128xf32> -> vector<2x128xf32>
    %85 = arith.addf %83, %84 : vector<2x128xf32>
    %86 = arith.negf %85 : vector<2x128xf32>
    %87 = math.exp %86 : vector<2x128xf32>
    %cst_30 = arith.constant 1.000000e+00 : f32
    %88 = vector.broadcast %cst_30 : f32 to vector<2x128xf32>
    %89 = arith.addf %88, %87 : vector<2x128xf32>
    %90 = arith.divf %88, %89 : vector<2x128xf32>
    %91 = math.tanh %85 : vector<2x128xf32>
    %92 = vector.extract_strided_slice %90 {offsets = [0, 0], sizes = [2, 32], strides = [1, 1]} : vector<2x128xf32> to vector<2x32xf32>
    %93 = vector.extract_strided_slice %90 {offsets = [0, 32], sizes = [2, 32], strides = [1, 1]} : vector<2x128xf32> to vector<2x32xf32>
    %94 = vector.extract_strided_slice %90 {offsets = [0, 64], sizes = [2, 32], strides = [1, 1]} : vector<2x128xf32> to vector<2x32xf32>
    %95 = vector.extract_strided_slice %91 {offsets = [0, 96], sizes = [2, 32], strides = [1, 1]} : vector<2x128xf32> to vector<2x32xf32>
    %96 = arith.mulf %93, %79 : vector<2x32xf32>
    %97 = arith.mulf %92, %95 : vector<2x32xf32>
    %98 = arith.addf %96, %97 : vector<2x32xf32>
    %99 = math.tanh %98 : vector<2x32xf32>
    %100 = arith.mulf %94, %99 : vector<2x32xf32>
    %101 = vector.extract_strided_slice %40 {offsets = [3, 0, 0], sizes = [1, 2, 128], strides = [1, 1, 1]} : vector<8x2x128xf32> to vector<1x2x128xf32>
    %102 = vector.shape_cast %101 : vector<1x2x128xf32> to vector<2x128xf32>
    %cst_31 = arith.constant dense<0.000000e+00> : vector<2x128xf32>
    %103 = tpu.matmul %100, %41, %cst_31 {dimension_numbers = #tpu.dot_dimension_numbers<[1], [0], [0], [1], [0, 0, 1, 1], [], []>} : vector<2x32xf32>, vector<32x128xf32>, vector<2x128xf32> -> vector<2x128xf32>
    %104 = arith.addf %102, %103 : vector<2x128xf32>
    %105 = arith.negf %104 : vector<2x128xf32>
    %106 = math.exp %105 : vector<2x128xf32>
    %cst_32 = arith.constant 1.000000e+00 : f32
    %107 = vector.broadcast %cst_32 : f32 to vector<2x128xf32>
    %108 = arith.addf %107, %106 : vector<2x128xf32>
    %109 = arith.divf %107, %108 : vector<2x128xf32>
    %110 = math.tanh %104 : vector<2x128xf32>
    %111 = vector.extract_strided_slice %109 {offsets = [0, 0], sizes = [2, 32], strides = [1, 1]} : vector<2x128xf32> to vector<2x32xf32>
    %112 = vector.extract_strided_slice %109 {offsets = [0, 32], sizes = [2, 32], strides = [1, 1]} : vector<2x128xf32> to vector<2x32xf32>
    %113 = vector.extract_strided_slice %109 {offsets = [0, 64], sizes = [2, 32], strides = [1, 1]} : vector<2x128xf32> to vector<2x32xf32>
    %114 = vector.extract_strided_slice %110 {offsets = [0, 96], sizes = [2, 32], strides = [1, 1]} : vector<2x128xf32> to vector<2x32xf32>
    %115 = arith.mulf %112, %98 : vector<2x32xf32>
    %116 = arith.mulf %111, %114 : vector<2x32xf32>
    %117 = arith.addf %115, %116 : vector<2x32xf32>
    %118 = math.tanh %117 : vector<2x32xf32>
    %119 = arith.mulf %113, %118 : vector<2x32xf32>
    %120 = vector.extract_strided_slice %40 {offsets = [4, 0, 0], sizes = [1, 2, 128], strides = [1, 1, 1]} : vector<8x2x128xf32> to vector<1x2x128xf32>
    %121 = vector.shape_cast %120 : vector<1x2x128xf32> to vector<2x128xf32>
    %cst_33 = arith.constant dense<0.000000e+00> : vector<2x128xf32>
    %122 = tpu.matmul %119, %41, %cst_33 {dimension_numbers = #tpu.dot_dimension_numbers<[1], [0], [0], [1], [0, 0, 1, 1], [], []>} : vector<2x32xf32>, vector<32x128xf32>, vector<2x128xf32> -> vector<2x128xf32>
    %123 = arith.addf %121, %122 : vector<2x128xf32>
    %124 = arith.negf %123 : vector<2x128xf32>
    %125 = math.exp %124 : vector<2x128xf32>
    %cst_34 = arith.constant 1.000000e+00 : f32
    %126 = vector.broadcast %cst_34 : f32 to vector<2x128xf32>
    %127 = arith.addf %126, %125 : vector<2x128xf32>
    %128 = arith.divf %126, %127 : vector<2x128xf32>
    %129 = math.tanh %123 : vector<2x128xf32>
    %130 = vector.extract_strided_slice %128 {offsets = [0, 0], sizes = [2, 32], strides = [1, 1]} : vector<2x128xf32> to vector<2x32xf32>
    %131 = vector.extract_strided_slice %128 {offsets = [0, 32], sizes = [2, 32], strides = [1, 1]} : vector<2x128xf32> to vector<2x32xf32>
    %132 = vector.extract_strided_slice %128 {offsets = [0, 64], sizes = [2, 32], strides = [1, 1]} : vector<2x128xf32> to vector<2x32xf32>
    %133 = vector.extract_strided_slice %129 {offsets = [0, 96], sizes = [2, 32], strides = [1, 1]} : vector<2x128xf32> to vector<2x32xf32>
    %134 = arith.mulf %131, %117 : vector<2x32xf32>
    %135 = arith.mulf %130, %133 : vector<2x32xf32>
    %136 = arith.addf %134, %135 : vector<2x32xf32>
    %137 = math.tanh %136 : vector<2x32xf32>
    %138 = arith.mulf %132, %137 : vector<2x32xf32>
    %139 = vector.extract_strided_slice %40 {offsets = [5, 0, 0], sizes = [1, 2, 128], strides = [1, 1, 1]} : vector<8x2x128xf32> to vector<1x2x128xf32>
    %140 = vector.shape_cast %139 : vector<1x2x128xf32> to vector<2x128xf32>
    %cst_35 = arith.constant dense<0.000000e+00> : vector<2x128xf32>
    %141 = tpu.matmul %138, %41, %cst_35 {dimension_numbers = #tpu.dot_dimension_numbers<[1], [0], [0], [1], [0, 0, 1, 1], [], []>} : vector<2x32xf32>, vector<32x128xf32>, vector<2x128xf32> -> vector<2x128xf32>
    %142 = arith.addf %140, %141 : vector<2x128xf32>
    %143 = arith.negf %142 : vector<2x128xf32>
    %144 = math.exp %143 : vector<2x128xf32>
    %cst_36 = arith.constant 1.000000e+00 : f32
    %145 = vector.broadcast %cst_36 : f32 to vector<2x128xf32>
    %146 = arith.addf %145, %144 : vector<2x128xf32>
    %147 = arith.divf %145, %146 : vector<2x128xf32>
    %148 = math.tanh %142 : vector<2x128xf32>
    %149 = vector.extract_strided_slice %147 {offsets = [0, 0], sizes = [2, 32], strides = [1, 1]} : vector<2x128xf32> to vector<2x32xf32>
    %150 = vector.extract_strided_slice %147 {offsets = [0, 32], sizes = [2, 32], strides = [1, 1]} : vector<2x128xf32> to vector<2x32xf32>
    %151 = vector.extract_strided_slice %147 {offsets = [0, 64], sizes = [2, 32], strides = [1, 1]} : vector<2x128xf32> to vector<2x32xf32>
    %152 = vector.extract_strided_slice %148 {offsets = [0, 96], sizes = [2, 32], strides = [1, 1]} : vector<2x128xf32> to vector<2x32xf32>
    %153 = arith.mulf %150, %136 : vector<2x32xf32>
    %154 = arith.mulf %149, %152 : vector<2x32xf32>
    %155 = arith.addf %153, %154 : vector<2x32xf32>
    %156 = math.tanh %155 : vector<2x32xf32>
    %157 = arith.mulf %151, %156 : vector<2x32xf32>
    %158 = vector.extract_strided_slice %40 {offsets = [6, 0, 0], sizes = [1, 2, 128], strides = [1, 1, 1]} : vector<8x2x128xf32> to vector<1x2x128xf32>
    %159 = vector.shape_cast %158 : vector<1x2x128xf32> to vector<2x128xf32>
    %cst_37 = arith.constant dense<0.000000e+00> : vector<2x128xf32>
    %160 = tpu.matmul %157, %41, %cst_37 {dimension_numbers = #tpu.dot_dimension_numbers<[1], [0], [0], [1], [0, 0, 1, 1], [], []>} : vector<2x32xf32>, vector<32x128xf32>, vector<2x128xf32> -> vector<2x128xf32>
    %161 = arith.addf %159, %160 : vector<2x128xf32>
    %162 = arith.negf %161 : vector<2x128xf32>
    %163 = math.exp %162 : vector<2x128xf32>
    %cst_38 = arith.constant 1.000000e+00 : f32
    %164 = vector.broadcast %cst_38 : f32 to vector<2x128xf32>
    %165 = arith.addf %164, %163 : vector<2x128xf32>
    %166 = arith.divf %164, %165 : vector<2x128xf32>
    %167 = math.tanh %161 : vector<2x128xf32>
    %168 = vector.extract_strided_slice %166 {offsets = [0, 0], sizes = [2, 32], strides = [1, 1]} : vector<2x128xf32> to vector<2x32xf32>
    %169 = vector.extract_strided_slice %166 {offsets = [0, 32], sizes = [2, 32], strides = [1, 1]} : vector<2x128xf32> to vector<2x32xf32>
    %170 = vector.extract_strided_slice %166 {offsets = [0, 64], sizes = [2, 32], strides = [1, 1]} : vector<2x128xf32> to vector<2x32xf32>
    %171 = vector.extract_strided_slice %167 {offsets = [0, 96], sizes = [2, 32], strides = [1, 1]} : vector<2x128xf32> to vector<2x32xf32>
    %172 = arith.mulf %169, %155 : vector<2x32xf32>
    %173 = arith.mulf %168, %171 : vector<2x32xf32>
    %174 = arith.addf %172, %173 : vector<2x32xf32>
    %175 = math.tanh %174 : vector<2x32xf32>
    %176 = arith.mulf %170, %175 : vector<2x32xf32>
    %177 = vector.extract_strided_slice %40 {offsets = [7, 0, 0], sizes = [1, 2, 128], strides = [1, 1, 1]} : vector<8x2x128xf32> to vector<1x2x128xf32>
    %178 = vector.shape_cast %177 : vector<1x2x128xf32> to vector<2x128xf32>
    %cst_39 = arith.constant dense<0.000000e+00> : vector<2x128xf32>
    %179 = tpu.matmul %176, %41, %cst_39 {dimension_numbers = #tpu.dot_dimension_numbers<[1], [0], [0], [1], [0, 0, 1, 1], [], []>} : vector<2x32xf32>, vector<32x128xf32>, vector<2x128xf32> -> vector<2x128xf32>
    %180 = arith.addf %178, %179 : vector<2x128xf32>
    %181 = arith.negf %180 : vector<2x128xf32>
    %182 = math.exp %181 : vector<2x128xf32>
    %cst_40 = arith.constant 1.000000e+00 : f32
    %183 = vector.broadcast %cst_40 : f32 to vector<2x128xf32>
    %184 = arith.addf %183, %182 : vector<2x128xf32>
    %185 = arith.divf %183, %184 : vector<2x128xf32>
    %186 = math.tanh %180 : vector<2x128xf32>
    %187 = vector.extract_strided_slice %185 {offsets = [0, 0], sizes = [2, 32], strides = [1, 1]} : vector<2x128xf32> to vector<2x32xf32>
    %188 = vector.extract_strided_slice %185 {offsets = [0, 32], sizes = [2, 32], strides = [1, 1]} : vector<2x128xf32> to vector<2x32xf32>
    %189 = vector.extract_strided_slice %185 {offsets = [0, 64], sizes = [2, 32], strides = [1, 1]} : vector<2x128xf32> to vector<2x32xf32>
    %190 = vector.extract_strided_slice %186 {offsets = [0, 96], sizes = [2, 32], strides = [1, 1]} : vector<2x128xf32> to vector<2x32xf32>
    %191 = arith.mulf %188, %174 : vector<2x32xf32>
    %192 = arith.mulf %187, %190 : vector<2x32xf32>
    %193 = arith.addf %191, %192 : vector<2x32xf32>
    %194 = math.tanh %193 : vector<2x32xf32>
    %195 = arith.mulf %189, %194 : vector<2x32xf32>
    %c0_41 = arith.constant 0 : index
    %c0_42 = arith.constant 0 : index
    %196 = vector.load %arg9[%c0_41, %c0_42] : memref<32x8xf32, #tpu.memory_space<vmem>>, vector<32x8xf32>
    %cst_43 = arith.constant dense<0.000000e+00> : vector<2x8xf32>
    %197 = tpu.matmul %195, %196, %cst_43 {dimension_numbers = #tpu.dot_dimension_numbers<[1], [0], [0], [1], [0, 0, 1, 1], [], []>} : vector<2x32xf32>, vector<32x8xf32>, vector<2x8xf32> -> vector<2x8xf32>
    %c0_44 = arith.constant 0 : index
    %c0_45 = arith.constant 0 : index
    %198 = vector.load %arg10[%c0_44, %c0_45] : memref<1x8xf32, #tpu.memory_space<vmem>>, vector<1x8xf32>
    %199 = vector.broadcast %198 : vector<1x8xf32> to vector<2x8xf32>
    %200 = arith.addf %197, %199 : vector<2x8xf32>
    %c0_46 = arith.constant 0 : index
    %c0_47 = arith.constant 0 : index
    %201 = vector.load %arg11[%c0_46, %c0_47] : memref<2x8xf32, #tpu.memory_space<vmem>>, vector<2x8xf32>
    tpu.vector_store %arg11[%c0_46, %c0_47], %200 {strides = array<i32>} : memref<2x8xf32, #tpu.memory_space<vmem>>, vector<2x8xf32>,
    return
  }
  func.func @transform_0(%arg0: i32) -> (i32, i32, i32) {
    %c0_i32 = arith.constant 0 : i32
    %c0_i32_0 = arith.constant 0 : i32
    %c0_i32_1 = arith.constant 0 : i32
    %c0_i32_2 = arith.constant 0 : i32
    return %c0_i32, %c0_i32_0, %c0_i32_1 : i32, i32, i32
  }
  func.func @transform_1(%arg0: i32) -> (i32, i32) {
    %c0_i32 = arith.constant 0 : i32
    %c0_i32_0 = arith.constant 0 : i32
    %c0_i32_1 = arith.constant 0 : i32
    return %c0_i32, %c0_i32_0 : i32, i32
  }
  func.func @transform_2(%arg0: i32) -> (i32, i32) {
    %c0_i32 = arith.constant 0 : i32
    %c0_i32_0 = arith.constant 0 : i32
    %c0_i32_1 = arith.constant 0 : i32
    return %c0_i32, %c0_i32_0 : i32, i32
  }
  func.func @transform_3(%arg0: i32) -> (i32, i32) {
    %c0_i32 = arith.constant 0 : i32
    %c0_i32_0 = arith.constant 0 : i32
    %c0_i32_1 = arith.constant 0 : i32
    return %c0_i32, %c0_i32_0 : i32, i32
  }
  func.func @transform_4(%arg0: i32) -> (i32, i32) {
    %c0_i32 = arith.constant 0 : i32
    %c0_i32_0 = arith.constant 0 : i32
    %c0_i32_1 = arith.constant 0 : i32
    return %c0_i32, %c0_i32_0 : i32, i32
  }
  func.func @transform_5(%arg0: i32) -> (i32, i32) {
    %c0_i32 = arith.constant 0 : i32
    %c0_i32_0 = arith.constant 0 : i32
    %c0_i32_1 = arith.constant 0 : i32
    return %c0_i32, %c0_i32_0 : i32, i32
  }
  func.func @transform_6(%arg0: i32) -> (i32, i32) {
    %c0_i32 = arith.constant 0 : i32
    %c0_i32_0 = arith.constant 0 : i32
    %c0_i32_1 = arith.constant 0 : i32
    return %c0_i32, %c0_i32_0 : i32, i32
  }
  func.func @transform_7(%arg0: i32) -> (i32, i32) {
    %c0_i32 = arith.constant 0 : i32
    %c0_i32_0 = arith.constant 0 : i32
    %c0_i32_1 = arith.constant 0 : i32
    return %c0_i32, %c0_i32_0 : i32, i32
  }
  func.func @transform_8(%arg0: i32) -> (i32, i32) {
    %c0_i32 = arith.constant 0 : i32
    %c0_i32_0 = arith.constant 0 : i32
    %c0_i32_1 = arith.constant 0 : i32
    return %c0_i32, %c0_i32_0 : i32, i32
  }
  func.func @transform_9(%arg0: i32) -> (i32, i32) {
    %c0_i32 = arith.constant 0 : i32
    %c0_i32_0 = arith.constant 0 : i32
    %c0_i32_1 = arith.constant 0 : i32
    return %c0_i32, %c0_i32_0 : i32, i32
  }
  func.func @transform_10(%arg0: i32) -> (i32, i32) {
    %c0_i32 = arith.constant 0 : i32
    %c0_i32_0 = arith.constant 0 : i32
    %c0_i32_1 = arith.constant 0 : i32
    return %c0_i32, %c0_i32_0 : i32, i32
  }
}

</mosaic_0001>

<llo_original>
// kernel: tpu_custom_call.1
$region0: #{tpu_custom_call.1}
  #allocation0 [shape = 'u32[]', space=smem, size = 0x4, offset = 0x4, fixed_abs, tag = 'smem constant byte address 0x4 - core index']
  #allocation1 [shape = 'u32[144,128]{1,0:T(1,128)}', space=vmem, size = 0x12000, scoped, tag = 'internal scratch']
  %s0 = inlined_call_operand.vmem [shape: f32[2,16,4], index: 0, kind: input, shape index: {}]
  %s1 = inlined_call_operand.vmem [shape: f32[12,64], index: 1, kind: input, shape index: {}]
  %s2 = inlined_call_operand.vmem [shape: f32[1,64], index: 2, kind: input, shape index: {}]
  %s3 = inlined_call_operand.vmem [shape: f32[192,64], index: 3, kind: input, shape index: {}]
  %s4 = inlined_call_operand.vmem [shape: f32[1,64], index: 4, kind: input, shape index: {}]
  %s5 = inlined_call_operand.vmem [shape: f32[64,128], index: 5, kind: input, shape index: {}]
  %s6 = inlined_call_operand.vmem [shape: f32[32,128], index: 6, kind: input, shape index: {}]
  %s7 = inlined_call_operand.vmem [shape: f32[1,128], index: 7, kind: input, shape index: {}]
  %s8 = inlined_call_operand.vmem [shape: f32[32,8], index: 8, kind: input, shape index: {}]
  %s9 = inlined_call_operand.vmem [shape: f32[1,8], index: 9, kind: input, shape index: {}]
  %s10 = inlined_call_operand.hbm [shape: f32[2,8], index: 10, kind: output, shape index: {}]
  %s11 = sld [smem:[#allocation0]]
  $region50: #{tpu_custom_call.1} parent=0
    _
  %s13 = ssub.s32 1, %s11
  %s14 = scalar_select 0, %s13, %s11
  $region1: #{tpu_custom_call.1} parent=0
    #allocation2 [shape = 'u8[1024]{0}', space=vmem, size = 0x400, scoped, tag = 'output window, operand 0, single buffered']
    #allocation3 [shape = 's32[1]{0}', space=sflag, size = 0x4, scoped, tag = 'scoped memory for tpu_custom_call.1']
    %15 = vsyncpa [#allocation3], 0
    // Predicated region
    $region2: #{tpu_custom_call.1} parent=1 // pred_check
      _
    $region3: #{tpu_custom_call.1} parent=1 // pred_check_branch
      %17 = sbr.rel (0) target = $region5
    $region4: #{tpu_custom_call.1} parent=1 // pred_region
      _
    $region5: #{tpu_custom_call.1} parent=1 // pred_fallthru
      _
    // Predicated region
    $region6: #{tpu_custom_call.1} parent=1 // pred_check
      _
    $region7: #{tpu_custom_call.1} parent=1 // pred_check_branch
      %19 = sbr.rel (0) target = $region9
    $region8: #{tpu_custom_call.1} parent=1 // pred_region
      _
    $region9: #{tpu_custom_call.1} parent=1 // pred_fallthru
      _
    // Predicated region
    $region10: #{tpu_custom_call.1} parent=1 // pred_check
      _
    $region11: #{tpu_custom_call.1} parent=1 // pred_check_branch
      %21 = sbr.rel (0) target = $region13
    $region12: #{tpu_custom_call.1} parent=1 // pred_region
      _
    $region13: #{tpu_custom_call.1} parent=1 // pred_fallthru
      _
    // Predicated region
    $region14: #{tpu_custom_call.1} parent=1 // pred_check
      _
    $region15: #{tpu_custom_call.1} parent=1 // pred_check_branch
      %23 = sbr.rel (0) target = $region17
    $region16: #{tpu_custom_call.1} parent=1 // pred_region
      _
    $region17: #{tpu_custom_call.1} parent=1 // pred_fallthru
      _
    // Predicated region
    $region18: #{tpu_custom_call.1} parent=1 // pred_check
      _
    $region19: #{tpu_custom_call.1} parent=1 // pred_check_branch
      %25 = sbr.rel (0) target = $region21
    $region20: #{tpu_custom_call.1} parent=1 // pred_region
      _
    $region21: #{tpu_custom_call.1} parent=1 // pred_fallthru
      _
    // Predicated region
    $region22: #{tpu_custom_call.1} parent=1 // pred_check
      _
    $region23: #{tpu_custom_call.1} parent=1 // pred_check_branch
      %27 = sbr.rel (0) target = $region25
    $region24: #{tpu_custom_call.1} parent=1 // pred_region
      _
    $region25: #{tpu_custom_call.1} parent=1 // pred_fallthru
      _
    // Predicated region
    $region26: #{tpu_custom_call.1} parent=1 // pred_check
      _
    $region27: #{tpu_custom_call.1} parent=1 // pred_check_branch
      %29 = sbr.rel (0) target = $region29
    $region28: #{tpu_custom_call.1} parent=1 // pred_region
      _
    $region29: #{tpu_custom_call.1} parent=1 // pred_fallthru
      _
    // Predicated region
    $region30: #{tpu_custom_call.1} parent=1 // pred_check
      _
    $region31: #{tpu_custom_call.1} parent=1 // pred_check_branch
      %31 = sbr.rel (0) target = $region33
    $region32: #{tpu_custom_call.1} parent=1 // pred_region
      _
    $region33: #{tpu_custom_call.1} parent=1 // pred_fallthru
      _
    // Predicated region
    $region34: #{tpu_custom_call.1} parent=1 // pred_check
      _
    $region35: #{tpu_custom_call.1} parent=1 // pred_check_branch
      %33 = sbr.rel (0) target = $region37
    $region36: #{tpu_custom_call.1} parent=1 // pred_region
      _
    $region37: #{tpu_custom_call.1} parent=1 // pred_fallthru
      _
    // Predicated region
    $region38: #{tpu_custom_call.1} parent=1 // pred_check
      _
    $region39: #{tpu_custom_call.1} parent=1 // pred_check_branch
      %35 = sbr.rel (0) target = $region41
    $region40: #{tpu_custom_call.1} parent=1 // pred_region
      _
    $region41: #{tpu_custom_call.1} parent=1 // pred_fallthru
      _
    %v36 = vld [vmem:[%s0] sm:$0xff]
    %v37 = vld [vmem:[%s0 + $0x8] sm:$0xff]
    %v38 = vld [vmem:[%s0 + $0x10] sm:$0xff]
    %v39 = vld [vmem:[%s0 + $0x18] sm:$0xff]
    %vm44 = vcmask 1040384
    %v45 = vrot.slane %v36, 7
    %v46 = vrot.slane %v37, 7
    %v47 = vsel %vm44, %v45, %v46
    %v48 = vrot.slane %v38, 7
    %v49 = vrot.slane %v39, 7
    %v50 = vsel %vm44, %v48, %v49
    %v57 = vsel %vm44, 0.0, %v45
    %v58 = vsel %vm44, 0.0, %v48
    %v59 = vsel %vm44, %v46, 0.0
    %v60 = vsel %vm44, %v49, 0.0
    %vm65 = vcmask 1046528
    %v66 = vrot.slane %v57, 1
    %v67 = vrot.slane %v47, 1
    %v68 = vsel %vm65, %v66, %v67
    %v69 = vrot.slane %v59, 1
    %v70 = vsel %vm65, %v67, %v69
    %v71 = vrot.slane %v58, 1
    %v72 = vrot.slane %v50, 1
    %v73 = vsel %vm65, %v71, %v72
    %v74 = vrot.slane %v60, 1
    %v75 = vsel %vm65, %v72, %v74
    %76 = vrot.lane.b32.xlu0 %v68, 4
    %v77 = vpop.permute.xlu0 %76
    %78 = vrot.lane.b32.xlu0 %v70, 4
    %v79 = vpop.permute.xlu0 %78
    %80 = vrot.lane.b32.xlu0 %v73, 4
    %v81 = vpop.permute.xlu0 %80
    %82 = vrot.lane.b32.xlu0 %v75, 4
    %v83 = vpop.permute.xlu0 %82
    %vm88 = vcmask 1045504
    %v89 = vrot.slane %v57, 2
    %v90 = vrot.slane %v47, 2
    %v91 = vsel %vm88, %v89, %v90
    %v92 = vrot.slane %v59, 2
    %v93 = vsel %vm88, %v90, %v92
    %v94 = vrot.slane %v58, 2
    %v95 = vrot.slane %v50, 2
    %v96 = vsel %vm88, %v94, %v95
    %v97 = vrot.slane %v60, 2
    %v98 = vsel %vm88, %v95, %v97
    %99 = vrot.lane.b32.xlu0 %v91, 8
    %v100 = vpop.permute.xlu0 %99
    %101 = vrot.lane.b32.xlu0 %v93, 8
    %v102 = vpop.permute.xlu0 %101
    %103 = vrot.lane.b32.xlu0 %v96, 8
    %v104 = vpop.permute.xlu0 %103
    %105 = vrot.lane.b32.xlu0 %v98, 8
    %v106 = vpop.permute.xlu0 %105
    %vm111 = vcmask 31744
    %v112 = vsel %vm111, %v57, %v77
    %v113 = vsel %vm111, %v47, %v79
    %v114 = vsel %vm111, %v58, %v81
    %v115 = vsel %vm111, %v50, %v83
    %vm116 = vcmask 64512
    %v117 = vsel %vm116, %v112, %v100
    %v118 = vsel %vm116, %v113, %v102
    %v119 = vsel %vm116, %v114, %v104
    %v120 = vsel %vm116, %v115, %v106
    %v121 = vld [vmem:[%s1] sm:$0xff]
    %v122 = vld [vmem:[%s1 + $0x8] sm:$0xf]
    %v123 = vld [vmem:[%s2] sm:$0x1]
    %v125 = vlaneseq
    %v126 = vshrl.u32 %v125, 7
    %v127 = vsub.s32 0, %v126
    %v128 = vrot.slane %v123, %v127
    %vm130 = vcmask 97280
    %v132 = vsel %vm130, %v117, 0
    %v135 = vsel %vm130, %v118, 0
    %v138 = vsel %vm130, %v119, 0
    %v141 = vsel %vm130, %v120, 0
    %vm143 = vcmask 1043456
    %v145 = vsel %vm143, %v122, 0
    %147 = vmatprep.subr.mxu0 0.0
    %148 = vmatpush1.msra.mxu0 %v121
    %149 = vmatprep.subr.mxu0 0.0
    %150 = vmatpush1.msra.mxu0 %v145
    %151 = vmatprep.subr.mxu0 0.0
    %152 = vmatpush1.msra.mxu0 0.0
    %153 = vmatprep.subr.mxu0 0.0
    %154 = vmatpush1.msra.mxu0 0.0
    %155 = vmatprep.subr.mxu0 0.0
    %156 = vmatpush1.msra.mxu0 0.0
    %157 = vmatprep.subr.mxu0 0.0
    %158 = vmatpush1.msra.mxu0 0.0
    %159 = vmatprep.subr.mxu0 0.0
    %160 = vmatpush1.msra.mxu0 0.0
    %161 = vmatprep.subr.mxu0 0.0
    %162 = vmatpush1.msra.mxu0 0.0
    %163 = vmatprep.subr.mxu0 0.0
    %164 = vmatpush1.msra.mxu0 0.0
    %165 = vmatprep.subr.mxu0 0.0
    %166 = vmatpush1.msra.mxu0 0.0
    %167 = vmatprep.subr.mxu0 0.0
    %168 = vmatpush1.msra.mxu0 0.0
    %169 = vmatprep.subr.mxu0 0.0
    %170 = vmatpush1.msra.mxu0 0.0
    %171 = vmatprep.subr.mxu0 0.0
    %172 = vmatpush1.msra.mxu0 0.0
    %173 = vmatprep.subr.mxu0 0.0
    %174 = vmatpush1.msra.mxu0 0.0
    %175 = vmatprep.subr.mxu0 0.0
    %176 = vmatpush1.msra.mxu0 0.0
    %177 = vmatprep.subr.mxu0 0.0
    %178 = vmatpush1.msra.mxu0 0.0
    %179 = vmatprep.subr.mxu0 0.0
    %180 = vmatpush1.msra.mxu0 0.0
    %181 = vmatprep.subr.mxu0 0.0
    %182 = vmatpush1.msra.mxu0 0.0
    %183 = vmatprep.subr.mxu0 0.0
    %184 = vmatpush1.msra.mxu0 0.0
    %185 = vmatprep.subr.mxu0 0.0
    %186 = vmatpush1.msra.mxu0 0.0
    %187 = vmatprep.subr.mxu0 0.0
    %188 = vmatpush1.msra.mxu0 0.0
    %189 = vmatprep.subr.mxu0 0.0
    %190 = vmatpush1.msra.mxu0 0.0
    %191 = vmatprep.subr.mxu0 0.0
    %192 = vmatpush1.msra.mxu0 0.0
    %193 = vmatprep.subr.mxu0 0.0
    %194 = vmatpush1.msra.mxu0 0.0
    %195 = vmatprep.subr.mxu0 0.0
    %196 = vmatpush1.msra.mxu0 0.0
    %197 = vmatprep.subr.mxu0 0.0
    %198 = vmatpush1.msra.mxu0 0.0
    %199 = vmatprep.subr.mxu0 0.0
    %200 = vmatpush1.msra.mxu0 0.0
    %201 = vmatprep.subr.mxu0 0.0
    %202 = vmatpush1.msra.mxu0 0.0
    %203 = vmatprep.subr.mxu0 0.0
    %204 = vmatpush1.msra.mxu0 0.0
    %205 = vmatprep.subr.mxu0 0.0
    %206 = vmatpush1.msra.mxu0 0.0
    %207 = vmatprep.subr.mxu0 0.0
    %208 = vmatpush1.msra.mxu0 0.0
    %209 = vmatprep.subr.mxu0 0.0
    %210 = vmatpush1.msra.mxu0 0.0
    %211 = vmatprep.mubr.f32.mxu0 0.0
    %212 = vmatmul.mubr.f32.gmra.mrb[0].mxu0 %v132
    %v213 = vpop.f32.mrb[0].mxu0
    %v214 = vadd.f32 %v128, %v213
    %v215 = vpop.f32.mrb[0].mxu0
    %216 = vmatprep.mubr.f32.mxu0 0.0
    %217 = vmatmul.mubr.f32.gmra.mrb[0].mxu0 %v135
    %v218 = vpop.f32.mrb[0].mxu0
    %v219 = vadd.f32 %v128, %v218
    %v220 = vpop.f32.mrb[0].mxu0
    %221 = vmatprep.mubr.f32.mxu0 0.0
    %222 = vmatmul.mubr.f32.gmra.mrb[0].mxu0 %v138
    %v223 = vpop.f32.mrb[0].mxu0
    %v224 = vadd.f32 %v128, %v223
    %v225 = vpop.f32.mrb[0].mxu0
    %226 = vmatprep.mubr.f32.mxu0 0.0
    %227 = vmatmul.mubr.f32.gmra.mrb[0].mxu0 %v141
    %v228 = vpop.f32.mrb[0].mxu0
    %v229 = vadd.f32 %v128, %v228
    %v230 = vpop.f32.mrb[0].mxu0
    %231 = vdwg.mxu0
    %v232 = vmax.f32 %v214, 0.0
    %v233 = vmax.f32 %v219, 0.0
    %v234 = vmax.f32 %v224, 0.0
    %v235 = vmax.f32 %v229, 0.0
    %v240 = vrot.slane %v232, 7
    %v241 = vrot.slane %v233, 7
    %v242 = vsel %vm44, %v240, %v241
    %v243 = vrot.slane %v234, 7
    %v244 = vrot.slane %v235, 7
    %v245 = vsel %vm44, %v243, %v244
    %v252 = vsel %vm44, 0.0, %v240
    %v253 = vsel %vm44, 0.0, %v243
    %v254 = vsel %vm44, %v241, 0.0
    %v255 = vsel %vm44, %v244, 0.0
    %v260 = vrot.slane %v252, 1
    %v261 = vrot.slane %v242, 1
    %v262 = vsel %vm65, %v260, %v261
    %v263 = vrot.slane %v254, 1
    %v264 = vsel %vm65, %v261, %v263
    %v265 = vrot.slane %v253, 1
    %v266 = vrot.slane %v245, 1
    %v267 = vsel %vm65, %v265, %v266
    %v268 = vrot.slane %v255, 1
    %v269 = vsel %vm65, %v266, %v268
    %270 = vrot.lane.b32.xlu0 %v262, 64
    %v271 = vpop.permute.xlu0 %270
    %272 = vrot.lane.b32.xlu0 %v264, 64
    %v273 = vpop.permute.xlu0 %272
    %274 = vrot.lane.b32.xlu0 %v267, 64
    %v275 = vpop.permute.xlu0 %274
    %276 = vrot.lane.b32.xlu0 %v269, 64
    %v277 = vpop.permute.xlu0 %276
    %v282 = vrot.slane %v252, 2
    %v283 = vrot.slane %v242, 2
    %v284 = vsel %vm88, %v282, %v283
    %v285 = vrot.slane %v254, 2
    %v286 = vsel %vm88, %v283, %v285
    %v287 = vrot.slane %v253, 2
    %v288 = vrot.slane %v245, 2
    %v289 = vsel %vm88, %v287, %v288
    %v290 = vrot.slane %v255, 2
    %v291 = vsel %vm88, %v288, %v290
    %vm292 = vcmask 523264
    %v293 = vsel %vm292, %v252, %v271
    %v294 = vsel %vm292, %v242, %v273
    %v295 = vsel %vm292, %v253, %v275
    %v296 = vsel %vm292, %v245, %v277
    %v297 = vld [vmem:[%s3] sm:$0xff]
    %v298 = vld [vmem:[%s3 + $0x8] sm:$0xff]
    %v299 = vld [vmem:[%s3 + $0x10] sm:$0xff]
    %v300 = vld [vmem:[%s3 + $0x18] sm:$0xff]
    %v301 = vld [vmem:[%s3 + $0x20] sm:$0xff]
    %v302 = vld [vmem:[%s3 + $0x28] sm:$0xff]
    %v303 = vld [vmem:[%s3 + $0x30] sm:$0xff]
    %v304 = vld [vmem:[%s3 + $0x38] sm:$0xff]
    %v305 = vld [vmem:[%s3 + $0x40] sm:$0xff]
    %v306 = vld [vmem:[%s3 + $0x48] sm:$0xff]
    %v307 = vld [vmem:[%s3 + $0x50] sm:$0xff]
    %v308 = vld [vmem:[%s3 + $0x58] sm:$0xff]
    %v309 = vld [vmem:[%s3 + $0x60] sm:$0xff]
    %v310 = vld [vmem:[%s3 + $0x68] sm:$0xff]
    %v311 = vld [vmem:[%s3 + $0x70] sm:$0xff]
    %v312 = vld [vmem:[%s3 + $0x78] sm:$0xff]
    %v313 = vld [vmem:[%s3 + $0x80] sm:$0xff]
    %v314 = vld [vmem:[%s3 + $0x88] sm:$0xff]
    %v315 = vld [vmem:[%s3 + $0x90] sm:$0xff]
    %v316 = vld [vmem:[%s3 + $0x98] sm:$0xff]
    %v317 = vld [vmem:[%s3 + $0xa0] sm:$0xff]
    %v318 = vld [vmem:[%s3 + $0xa8] sm:$0xff]
    %v319 = vld [vmem:[%s3 + $0xb0] sm:$0xff]
    %v320 = vld [vmem:[%s3 + $0xb8] sm:$0xff]
    %v321 = vld [vmem:[%s4] sm:$0x1]
    %v323 = vlaneseq
    %v324 = vshrl.u32 %v323, 7
    %v325 = vsub.s32 0, %v324
    %v326 = vrot.slane %v321, %v325
    %v328 = vsel %vm292, %v284, 0
    %v330 = vsel %vm292, %v286, 0
    %v332 = vsel %vm292, %v289, 0
    %v334 = vsel %vm292, %v291, 0
    %336 = vmatprep.subr.mxu0 0.0
    %337 = vmatpush1.msra.mxu0 %v297
    %338 = vmatprep.subr.mxu0 0.0
    %339 = vmatpush1.msra.mxu0 %v298
    %340 = vmatprep.subr.mxu0 0.0
    %341 = vmatpush1.msra.mxu0 %v299
    %342 = vmatprep.subr.mxu0 0.0
    %343 = vmatpush1.msra.mxu0 %v300
    %344 = vmatprep.subr.mxu0 0.0
    %345 = vmatpush1.msra.mxu0 %v301
    %346 = vmatprep.subr.mxu0 0.0
    %347 = vmatpush1.msra.mxu0 %v302
    %348 = vmatprep.subr.mxu0 0.0
    %349 = vmatpush1.msra.mxu0 %v303
    %350 = vmatprep.subr.mxu0 0.0
    %351 = vmatpush1.msra.mxu0 %v304
    %352 = vmatprep.subr.mxu0 0.0
    %353 = vmatpush1.msra.mxu0 %v305
    %354 = vmatprep.subr.mxu0 0.0
    %355 = vmatpush1.msra.mxu0 %v306
    %356 = vmatprep.subr.mxu0 0.0
    %357 = vmatpush1.msra.mxu0 %v307
    %358 = vmatprep.subr.mxu0 0.0
    %359 = vmatpush1.msra.mxu0 %v308
    %360 = vmatprep.subr.mxu0 0.0
    %361 = vmatpush1.msra.mxu0 %v309
    %362 = vmatprep.subr.mxu0 0.0
    %363 = vmatpush1.msra.mxu0 %v310
    %364 = vmatprep.subr.mxu0 0.0
    %365 = vmatpush1.msra.mxu0 %v311
    %366 = vmatprep.subr.mxu0 0.0
    %367 = vmatpush1.msra.mxu0 %v312
    %368 = vmatprep.subr.mxu0 0.0
    %369 = vmatpush1.msra.mxu0 %v313
    %370 = vmatprep.subr.mxu0 0.0
    %371 = vmatpush1.msra.mxu0 %v314
    %372 = vmatprep.subr.mxu0 0.0
    %373 = vmatpush1.msra.mxu0 %v315
    %374 = vmatprep.subr.mxu0 0.0
    %375 = vmatpush1.msra.mxu0 %v316
    %376 = vmatprep.subr.mxu0 0.0
    %377 = vmatpush1.msra.mxu0 %v317
    %378 = vmatprep.subr.mxu0 0.0
    %379 = vmatpush1.msra.mxu0 %v318
    %380 = vmatprep.subr.mxu0 0.0
    %381 = vmatpush1.msra.mxu0 %v319
    %382 = vmatprep.subr.mxu0 0.0
    %383 = vmatpush1.msra.mxu0 %v320
    %384 = vmatprep.subr.mxu0 0.0
    %385 = vmatpush1.msra.mxu0 0.0
    %386 = vmatprep.subr.mxu0 0.0
    %387 = vmatpush1.msra.mxu0 0.0
    %388 = vmatprep.subr.mxu0 0.0
    %389 = vmatpush1.msra.mxu0 0.0
    %390 = vmatprep.subr.mxu0 0.0
    %391 = vmatpush1.msra.mxu0 0.0
    %392 = vmatprep.subr.mxu0 0.0
    %393 = vmatpush1.msra.mxu0 0.0
    %394 = vmatprep.subr.mxu0 0.0
    %395 = vmatpush1.msra.mxu0 0.0
    %396 = vmatprep.subr.mxu0 0.0
    %397 = vmatpush1.msra.mxu0 0.0
    %398 = vmatprep.subr.mxu0 0.0
    %399 = vmatpush1.msra.mxu0 0.0
    %400 = vmatprep.mubr.f32.mxu0 %v328
    %401 = vmatmul.mubr.f32.gmra.mrb[0].mxu0 %v293
    %v402 = vpop.f32.mrb[0].mxu0
    %v403 = vadd.f32 %v326, %v402
    %v404 = vpop.f32.mrb[0].mxu0
    %405 = vmatprep.mubr.f32.mxu0 %v330
    %406 = vmatmul.mubr.f32.gmra.mrb[0].mxu0 %v294
    %v407 = vpop.f32.mrb[0].mxu0
    %v408 = vadd.f32 %v326, %v407
    %v409 = vpop.f32.mrb[0].mxu0
    %410 = vmatprep.mubr.f32.mxu0 %v332
    %411 = vmatmul.mubr.f32.gmra.mrb[0].mxu0 %v295
    %v412 = vpop.f32.mrb[0].mxu0
    %v413 = vadd.f32 %v326, %v412
    %v414 = vpop.f32.mrb[0].mxu0
    %415 = vmatprep.mubr.f32.mxu0 %v334
    %416 = vmatmul.mubr.f32.gmra.mrb[0].mxu0 %v296
    %v417 = vpop.f32.mrb[0].mxu0
    %v418 = vadd.f32 %v326, %v417
    %v419 = vpop.f32.mrb[0].mxu0
    %420 = vdwg.mxu0
    %v421 = vmax.f32 %v403, 0.0
    %v422 = vmax.f32 %v408, 0.0
    %v423 = vmax.f32 %v413, 0.0
    %v424 = vmax.f32 %v418, 0.0
    %v429 = vcombine.high %v421, %v421
    %v431 = vunpack.c.l.s4 1983009808
    %v432 = vunpack.c.0.s8 %v431
    %v433 = vlaneseq
    %v434 = vshrl.u32 %v433, 7
    %v435 = vsub.s32 %v432, %v434
    %v436 = vrot.slane %v421, %v435
    %v438 = vunpack.c.l.s4 1983009808
    %v439 = vunpack.c.0.s8 %v438
    %v440 = vlaneseq
    %v441 = vshrl.u32 %v440, 7
    %v442 = vsub.s32 %v439, %v441
    %v443 = vrot.slane %v429, %v442
    %v444 = vcombine.high %v436, %v436
    %v445 = vcombine.high %v443, %v443
    %v446 = vcombine.high %v422, %v422
    %v448 = vunpack.c.l.s4 1983009808
    %v449 = vunpack.c.0.s8 %v448
    %v450 = vlaneseq
    %v451 = vshrl.u32 %v450, 7
    %v452 = vsub.s32 %v449, %v451
    %v453 = vrot.slane %v422, %v452
    %v455 = vunpack.c.l.s4 1983009808
    %v456 = vunpack.c.0.s8 %v455
    %v457 = vlaneseq
    %v458 = vshrl.u32 %v457, 7
    %v459 = vsub.s32 %v456, %v458
    %v460 = vrot.slane %v446, %v459
    %v461 = vcombine.high %v453, %v453
    %v462 = vcombine.high %v460, %v460
    %v463 = vcombine.high %v423, %v423
    %v465 = vunpack.c.l.s4 1983009808
    %v466 = vunpack.c.0.s8 %v465
    %v467 = vlaneseq
    %v468 = vshrl.u32 %v467, 7
    %v469 = vsub.s32 %v466, %v468
    %v470 = vrot.slane %v423, %v469
    %v472 = vunpack.c.l.s4 1983009808
    %v473 = vunpack.c.0.s8 %v472
    %v474 = vlaneseq
    %v475 = vshrl.u32 %v474, 7
    %v476 = vsub.s32 %v473, %v475
    %v477 = vrot.slane %v463, %v476
    %v478 = vcombine.high %v470, %v470
    %v479 = vcombine.high %v477, %v477
    %v480 = vcombine.high %v424, %v424
    %v482 = vunpack.c.l.s4 1983009808
    %v483 = vunpack.c.0.s8 %v482
    %v484 = vlaneseq
    %v485 = vshrl.u32 %v484, 7
    %v486 = vsub.s32 %v483, %v485
    %v487 = vrot.slane %v424, %v486
    %v489 = vunpack.c.l.s4 1983009808
    %v490 = vunpack.c.0.s8 %v489
    %v491 = vlaneseq
    %v492 = vshrl.u32 %v491, 7
    %v493 = vsub.s32 %v490, %v492
    %v494 = vrot.slane %v480, %v493
    %v495 = vcombine.high %v487, %v487
    %v496 = vcombine.high %v494, %v494
    %vm513 = vcmask 517120
    %v514 = vsel %vm513, %v436, -inf
    %v515 = vrot.slane %v514, 4
    %v516 = vmax.f32 %v514, %v515
    %v517 = vrot.slane %v516, 2
    %v518 = vmax.f32 %v516, %v517
    %v519 = vrot.slane %v518, 1
    %v520 = vmax.f32 %v518, %v519
    %v521 = vsel %vm513, %v444, -inf
    %v522 = vrot.slane %v521, 4
    %v523 = vmax.f32 %v521, %v522
    %v524 = vrot.slane %v523, 2
    %v525 = vmax.f32 %v523, %v524
    %v526 = vrot.slane %v525, 1
    %v527 = vmax.f32 %v525, %v526
    %v528 = vsel %vm513, %v443, -inf
    %v529 = vrot.slane %v528, 4
    %v530 = vmax.f32 %v528, %v529
    %v531 = vrot.slane %v530, 2
    %v532 = vmax.f32 %v530, %v531
    %v533 = vrot.slane %v532, 1
    %v534 = vmax.f32 %v532, %v533
    %v535 = vsel %vm513, %v445, -inf
    %v536 = vrot.slane %v535, 4
    %v537 = vmax.f32 %v535, %v536
    %v538 = vrot.slane %v537, 2
    %v539 = vmax.f32 %v537, %v538
    %v540 = vrot.slane %v539, 1
    %v541 = vmax.f32 %v539, %v540
    %v542 = vsel %vm513, %v453, -inf
    %v543 = vrot.slane %v542, 4
    %v544 = vmax.f32 %v542, %v543
    %v545 = vrot.slane %v544, 2
    %v546 = vmax.f32 %v544, %v545
    %v547 = vrot.slane %v546, 1
    %v548 = vmax.f32 %v546, %v547
    %v549 = vsel %vm513, %v461, -inf
    %v550 = vrot.slane %v549, 4
    %v551 = vmax.f32 %v549, %v550
    %v552 = vrot.slane %v551, 2
    %v553 = vmax.f32 %v551, %v552
    %v554 = vrot.slane %v553, 1
    %v555 = vmax.f32 %v553, %v554
    %v556 = vsel %vm513, %v460, -inf
    %v557 = vrot.slane %v556, 4
    %v558 = vmax.f32 %v556, %v557
    %v559 = vrot.slane %v558, 2
    %v560 = vmax.f32 %v558, %v559
    %v561 = vrot.slane %v560, 1
    %v562 = vmax.f32 %v560, %v561
    %v563 = vsel %vm513, %v462, -inf
    %v564 = vrot.slane %v563, 4
    %v565 = vmax.f32 %v563, %v564
    %v566 = vrot.slane %v565, 2
    %v567 = vmax.f32 %v565, %v566
    %v568 = vrot.slane %v567, 1
    %v569 = vmax.f32 %v567, %v568
    %v570 = vsel %vm513, %v470, -inf
    %v571 = vrot.slane %v570, 4
    %v572 = vmax.f32 %v570, %v571
    %v573 = vrot.slane %v572, 2
    %v574 = vmax.f32 %v572, %v573
    %v575 = vrot.slane %v574, 1
    %v576 = vmax.f32 %v574, %v575
    %v577 = vsel %vm513, %v478, -inf
    %v578 = vrot.slane %v577, 4
    %v579 = vmax.f32 %v577, %v578
    %v580 = vrot.slane %v579, 2
    %v581 = vmax.f32 %v579, %v580
    %v582 = vrot.slane %v581, 1
    %v583 = vmax.f32 %v581, %v582
    %v584 = vsel %vm513, %v477, -inf
    %v585 = vrot.slane %v584, 4
    %v586 = vmax.f32 %v584, %v585
    %v587 = vrot.slane %v586, 2
    %v588 = vmax.f32 %v586, %v587
    %v589 = vrot.slane %v588, 1
    %v590 = vmax.f32 %v588, %v589
    %v591 = vsel %vm513, %v479, -inf
    %v592 = vrot.slane %v591, 4
    %v593 = vmax.f32 %v591, %v592
    %v594 = vrot.slane %v593, 2
    %v595 = vmax.f32 %v593, %v594
    %v596 = vrot.slane %v595, 1
    %v597 = vmax.f32 %v595, %v596
    %v598 = vsel %vm513, %v487, -inf
    %v599 = vrot.slane %v598, 4
    %v600 = vmax.f32 %v598, %v599
    %v601 = vrot.slane %v600, 2
    %v602 = vmax.f32 %v600, %v601
    %v603 = vrot.slane %v602, 1
    %v604 = vmax.f32 %v602, %v603
    %v605 = vsel %vm513, %v495, -inf
    %v606 = vrot.slane %v605, 4
    %v607 = vmax.f32 %v605, %v606
    %v608 = vrot.slane %v607, 2
    %v609 = vmax.f32 %v607, %v608
    %v610 = vrot.slane %v609, 1
    %v611 = vmax.f32 %v609, %v610
    %v612 = vsel %vm513, %v494, -inf
    %v613 = vrot.slane %v612, 4
    %v614 = vmax.f32 %v612, %v613
    %v615 = vrot.slane %v614, 2
    %v616 = vmax.f32 %v614, %v615
    %v617 = vrot.slane %v616, 1
    %v618 = vmax.f32 %v616, %v617
    %v619 = vsel %vm513, %v496, -inf
    %v620 = vrot.slane %v619, 4
    %v621 = vmax.f32 %v619, %v620
    %v622 = vrot.slane %v621, 2
    %v623 = vmax.f32 %v621, %v622
    %v624 = vrot.slane %v623, 1
    %v625 = vmax.f32 %v623, %v624
    %vm642 = vcmask 1041409
    %v643 = vsel %vm642, %v527, %v520
    %vm644 = vcmask 1042434
    %v645 = vsel %vm644, %v534, %v643
    %vm646 = vcmask 1043459
    %v647 = vsel %vm646, %v541, %v645
    %vm648 = vcmask 1044484
    %v649 = vsel %vm648, %v548, %v647
    %vm650 = vcmask 1045509
    %v651 = vsel %vm650, %v555, %v649
    %vm652 = vcmask 1046534
    %v653 = vsel %vm652, %v562, %v651
    %vm654 = vcmask 1047559
    %v655 = vsel %vm654, %v569, %v653
    %v656 = vsel %vm642, %v583, %v576
    %v657 = vsel %vm644, %v590, %v656
    %v658 = vsel %vm646, %v597, %v657
    %v659 = vsel %vm648, %v604, %v658
    %v660 = vsel %vm650, %v611, %v659
    %v661 = vsel %vm652, %v618, %v660
    %v662 = vsel %vm654, %v625, %v661
    %v665 = vcombine.high %v655, 0.0
    %v667 = vunpack.c.l.s4 1983009808
    %v668 = vunpack.c.0.s8 %v667
    %v669 = vlaneseq
    %v670 = vshrl.u32 %v669, 7
    %v671 = vsub.s32 %v668, %v670
    %v672 = vrot.slane %v655, %v671
    %v674 = vunpack.c.l.s4 1983009808
    %v675 = vunpack.c.0.s8 %v674
    %v676 = vlaneseq
    %v677 = vshrl.u32 %v676, 7
    %v678 = vsub.s32 %v675, %v677
    %v679 = vrot.slane %v665, %v678
    %v680 = vcombine.high %v662, 0.0
    %v682 = vunpack.c.l.s4 1983009808
    %v683 = vunpack.c.0.s8 %v682
    %v684 = vlaneseq
    %v685 = vshrl.u32 %v684, 7
    %v686 = vsub.s32 %v683, %v685
    %v687 = vrot.slane %v662, %v686
    %v689 = vunpack.c.l.s4 1983009808
    %v690 = vunpack.c.0.s8 %v689
    %v691 = vlaneseq
    %v692 = vshrl.u32 %v691, 7
    %v693 = vsub.s32 %v690, %v692
    %v694 = vrot.slane %v680, %v693
    %v695 = vcombine.low %v672, %v687
    %v696 = vcombine.high %v672, %v687
    %v698 = vunpack.c.l.s4 1934713408
    %v699 = vunpack.c.0.s8 %v698
    %v700 = vlaneseq
    %v701 = vshrl.u32 %v700, 7
    %v702 = vsub.s32 %v699, %v701
    %v703 = vrot.slane %v695, %v702
    %v705 = vunpack.c.l.s4 1934713408
    %v706 = vunpack.c.0.s8 %v705
    %v707 = vlaneseq
    %v708 = vshrl.u32 %v707, 7
    %v709 = vsub.s32 %v706, %v708
    %v710 = vrot.slane %v696, %v709
    %v711 = vcombine.low %v679, %v694
    %v712 = vcombine.high %v679, %v694
    %v714 = vunpack.c.l.s4 1934713408
    %v715 = vunpack.c.0.s8 %v714
    %v716 = vlaneseq
    %v717 = vshrl.u32 %v716, 7
    %v718 = vsub.s32 %v715, %v717
    %v719 = vrot.slane %v711, %v718
    %v721 = vunpack.c.l.s4 1934713408
    %v722 = vunpack.c.0.s8 %v721
    %v723 = vlaneseq
    %v724 = vshrl.u32 %v723, 7
    %v725 = vsub.s32 %v722, %v724
    %v726 = vrot.slane %v712, %v725
    %v727 = vcombine.high %v703, 0.0
    %v728 = vcombine.high %v710, 0.0
    %v729 = vcombine.high %v719, 0.0
    %v730 = vcombine.high %v726, 0.0
    %v731 = vld [vmem:[%s5] sm:$0xff]
    %v732 = vld [vmem:[%s5 + $0x8] sm:$0xff]
    %v733 = vld [vmem:[%s5 + $0x10] sm:$0xff]
    %v734 = vld [vmem:[%s5 + $0x18] sm:$0xff]
    %v735 = vld [vmem:[%s5 + $0x20] sm:$0xff]
    %v736 = vld [vmem:[%s5 + $0x28] sm:$0xff]
    %v737 = vld [vmem:[%s5 + $0x30] sm:$0xff]
    %v738 = vld [vmem:[%s5 + $0x38] sm:$0xff]
    %v739 = vld [vmem:[%s7] sm:$0x1]
    %v741 = vlaneseq
    %v742 = vshrl.u32 %v741, 7
    %v743 = vsub.s32 0, %v742
    %v744 = vrot.slane %v739, %v743
    %v754 = vcombine.low %v703, %v727
    %v755 = vcombine.low %v710, %v728
    %v757 = vunpack.c.l.s4 1983009808
    %v758 = vunpack.c.0.s8 %v757
    %v759 = vlaneseq
    %v760 = vshrl.u32 %v759, 7
    %v761 = vsub.s32 %v758, %v760
    %v762 = vrot.slane %v754, %v761
    %v764 = vunpack.c.l.s4 1983009808
    %v765 = vunpack.c.0.s8 %v764
    %v766 = vlaneseq
    %v767 = vshrl.u32 %v766, 7
    %v768 = vsub.s32 %v765, %v767
    %v769 = vrot.slane %v755, %v768
    %v770 = vcombine.low %v762, %v769
    %v771 = vcombine.low %v719, %v729
    %v772 = vcombine.low %v726, %v730
    %v774 = vunpack.c.l.s4 1983009808
    %v775 = vunpack.c.0.s8 %v774
    %v776 = vlaneseq
    %v777 = vshrl.u32 %v776, 7
    %v778 = vsub.s32 %v775, %v777
    %v779 = vrot.slane %v771, %v778
    %v781 = vunpack.c.l.s4 1983009808
    %v782 = vunpack.c.0.s8 %v781
    %v783 = vlaneseq
    %v784 = vshrl.u32 %v783, 7
    %v785 = vsub.s32 %v782, %v784
    %v786 = vrot.slane %v772, %v785
    %v787 = vcombine.low %v779, %v786
    %v788 = vsel %vm292, %v770, 0
    %v790 = vsel %vm292, %v787, 0
    %792 = vmatprep.subr.mxu0 0.0
    %793 = vmatpush1.msra.mxu0 %v731
    %794 = vmatprep.subr.mxu0 0.0
    %795 = vmatpush1.msra.mxu0 %v732
    %796 = vmatprep.subr.mxu0 0.0
    %797 = vmatpush1.msra.mxu0 %v733
    %798 = vmatprep.subr.mxu0 0.0
    %799 = vmatpush1.msra.mxu0 %v734
    %800 = vmatprep.subr.mxu0 0.0
    %801 = vmatpush1.msra.mxu0 %v735
    %802 = vmatprep.subr.mxu0 0.0
    %803 = vmatpush1.msra.mxu0 %v736
    %804 = vmatprep.subr.mxu0 0.0
    %805 = vmatpush1.msra.mxu0 %v737
    %806 = vmatprep.subr.mxu0 0.0
    %807 = vmatpush1.msra.mxu0 %v738
    %808 = vmatprep.subr.mxu0 0.0
    %809 = vmatpush1.msra.mxu0 0.0
    %810 = vmatprep.subr.mxu0 0.0
    %811 = vmatpush1.msra.mxu0 0.0
    %812 = vmatprep.subr.mxu0 0.0
    %813 = vmatpush1.msra.mxu0 0.0
    %814 = vmatprep.subr.mxu0 0.0
    %815 = vmatpush1.msra.mxu0 0.0
    %816 = vmatprep.subr.mxu0 0.0
    %817 = vmatpush1.msra.mxu0 0.0
    %818 = vmatprep.subr.mxu0 0.0
    %819 = vmatpush1.msra.mxu0 0.0
    %820 = vmatprep.subr.mxu0 0.0
    %821 = vmatpush1.msra.mxu0 0.0
    %822 = vmatprep.subr.mxu0 0.0
    %823 = vmatpush1.msra.mxu0 0.0
    %824 = vmatprep.subr.mxu0 0.0
    %825 = vmatpush1.msra.mxu0 0.0
    %826 = vmatprep.subr.mxu0 0.0
    %827 = vmatpush1.msra.mxu0 0.0
    %828 = vmatprep.subr.mxu0 0.0
    %829 = vmatpush1.msra.mxu0 0.0
    %830 = vmatprep.subr.mxu0 0.0
    %831 = vmatpush1.msra.mxu0 0.0
    %832 = vmatprep.subr.mxu0 0.0
    %833 = vmatpush1.msra.mxu0 0.0
    %834 = vmatprep.subr.mxu0 0.0
    %835 = vmatpush1.msra.mxu0 0.0
    %836 = vmatprep.subr.mxu0 0.0
    %837 = vmatpush1.msra.mxu0 0.0
    %838 = vmatprep.subr.mxu0 0.0
    %839 = vmatpush1.msra.mxu0 0.0
    %840 = vmatprep.subr.mxu0 0.0
    %841 = vmatpush1.msra.mxu0 0.0
    %842 = vmatprep.subr.mxu0 0.0
    %843 = vmatpush1.msra.mxu0 0.0
    %844 = vmatprep.subr.mxu0 0.0
    %845 = vmatpush1.msra.mxu0 0.0
    %846 = vmatprep.subr.mxu0 0.0
    %847 = vmatpush1.msra.mxu0 0.0
    %848 = vmatprep.subr.mxu0 0.0
    %849 = vmatpush1.msra.mxu0 0.0
    %850 = vmatprep.subr.mxu0 0.0
    %851 = vmatpush1.msra.mxu0 0.0
    %852 = vmatprep.subr.mxu0 0.0
    %853 = vmatpush1.msra.mxu0 0.0
    %854 = vmatprep.subr.mxu0 0.0
    %855 = vmatpush1.msra.mxu0 0.0
    %856 = vmatprep.mubr.f32.mxu0 0.0
    %857 = vmatmul.mubr.f32.gmra.mrb[0].mxu0 %v788
    %v858 = vpop.f32.mrb[0].mxu0
    %v859 = vadd.f32 %v744, %v858
    %v860 = vpop.f32.mrb[0].mxu0
    %861 = vmatprep.mubr.f32.mxu0 0.0
    %862 = vmatmul.mubr.f32.gmra.mrb[0].mxu0 %v790
    %v863 = vpop.f32.mrb[0].mxu0
    %v864 = vadd.f32 %v744, %v863
    %v865 = vpop.f32.mrb[0].mxu0
    %866 = vdwg.mxu0
    %v869 = vcombine.high %v859, %v859
    %v871 = vunpack.c.l.s4 1983009808
    %v872 = vunpack.c.0.s8 %v871
    %v873 = vlaneseq
    %v874 = vshrl.u32 %v873, 7
    %v875 = vsub.s32 %v872, %v874
    %v876 = vrot.slane %v859, %v875
    %v878 = vunpack.c.l.s4 1983009808
    %v879 = vunpack.c.0.s8 %v878
    %v880 = vlaneseq
    %v881 = vshrl.u32 %v880, 7
    %v882 = vsub.s32 %v879, %v881
    %v883 = vrot.slane %v869, %v882
    %v884 = vcombine.high %v876, %v876
    %v885 = vcombine.high %v883, %v883
    %v886 = vcombine.high %v864, %v864
    %v888 = vunpack.c.l.s4 1983009808
    %v889 = vunpack.c.0.s8 %v888
    %v890 = vlaneseq
    %v891 = vshrl.u32 %v890, 7
    %v892 = vsub.s32 %v889, %v891
    %v893 = vrot.slane %v864, %v892
    %v895 = vunpack.c.l.s4 1983009808
    %v896 = vunpack.c.0.s8 %v895
    %v897 = vlaneseq
    %v898 = vshrl.u32 %v897, 7
    %v899 = vsub.s32 %v896, %v898
    %v900 = vrot.slane %v886, %v899
    %v901 = vcombine.high %v893, %v893
    %v902 = vcombine.high %v900, %v900
    %v911 = vld [vmem:[%s6] sm:$0xff]
    %v912 = vld [vmem:[%s6 + $0x8] sm:$0xff]
    %v913 = vld [vmem:[%s6 + $0x10] sm:$0xff]
    %v914 = vld [vmem:[%s6 + $0x18] sm:$0xff]
    %vm915 = vcmask 261120
    %v917 = vsel %vm915, 0.0, 0
    %919 = vmatprep.subr.mxu0 0.0
    %920 = vmatpush1.msra.mxu0 %v911
    %921 = vmatprep.subr.mxu0 0.0
    %922 = vmatpush1.msra.mxu0 %v912
    %923 = vmatprep.subr.mxu0 0.0
    %924 = vmatpush1.msra.mxu0 %v913
    %925 = vmatprep.subr.mxu0 0.0
    %926 = vmatpush1.msra.mxu0 %v914
    %927 = vmatprep.subr.mxu0 0.0
    %928 = vmatpush1.msra.mxu0 0.0
    %929 = vmatprep.subr.mxu0 0.0
    %930 = vmatpush1.msra.mxu0 0.0
    %931 = vmatprep.subr.mxu0 0.0
    %932 = vmatpush1.msra.mxu0 0.0
    %933 = vmatprep.subr.mxu0 0.0
    %934 = vmatpush1.msra.mxu0 0.0
    %935 = vmatprep.subr.mxu0 0.0
    %936 = vmatpush1.msra.mxu0 0.0
    %937 = vmatprep.subr.mxu0 0.0
    %938 = vmatpush1.msra.mxu0 0.0
    %939 = vmatprep.subr.mxu0 0.0
    %940 = vmatpush1.msra.mxu0 0.0
    %941 = vmatprep.subr.mxu0 0.0
    %942 = vmatpush1.msra.mxu0 0.0
    %943 = vmatprep.subr.mxu0 0.0
    %944 = vmatpush1.msra.mxu0 0.0
    %945 = vmatprep.subr.mxu0 0.0
    %946 = vmatpush1.msra.mxu0 0.0
    %947 = vmatprep.subr.mxu0 0.0
    %948 = vmatpush1.msra.mxu0 0.0
    %949 = vmatprep.subr.mxu0 0.0
    %950 = vmatpush1.msra.mxu0 0.0
    %951 = vmatprep.subr.mxu0 0.0
    %952 = vmatpush1.msra.mxu0 0.0
    %953 = vmatprep.subr.mxu0 0.0
    %954 = vmatpush1.msra.mxu0 0.0
    %955 = vmatprep.subr.mxu0 0.0
    %956 = vmatpush1.msra.mxu0 0.0
    %957 = vmatprep.subr.mxu0 0.0
    %958 = vmatpush1.msra.mxu0 0.0
    %959 = vmatprep.subr.mxu0 0.0
    %960 = vmatpush1.msra.mxu0 0.0
    %961 = vmatprep.subr.mxu0 0.0
    %962 = vmatpush1.msra.mxu0 0.0
    %963 = vmatprep.subr.mxu0 0.0
    %964 = vmatpush1.msra.mxu0 0.0
    %965 = vmatprep.subr.mxu0 0.0
    %966 = vmatpush1.msra.mxu0 0.0
    %967 = vmatprep.subr.mxu0 0.0
    %968 = vmatpush1.msra.mxu0 0.0
    %969 = vmatprep.subr.mxu0 0.0
    %970 = vmatpush1.msra.mxu0 0.0
    %971 = vmatprep.subr.mxu0 0.0
    %972 = vmatpush1.msra.mxu0 0.0
    %973 = vmatprep.subr.mxu0 0.0
    %974 = vmatpush1.msra.mxu0 0.0
    %975 = vmatprep.subr.mxu0 0.0
    %976 = vmatpush1.msra.mxu0 0.0
    %977 = vmatprep.subr.mxu0 0.0
    %978 = vmatpush1.msra.mxu0 0.0
    %979 = vmatprep.subr.mxu0 0.0
    %980 = vmatpush1.msra.mxu0 0.0
    %981 = vmatprep.subr.mxu0 0.0
    %982 = vmatpush1.msra.mxu0 0.0
    %983 = vmatprep.mubr.f32.mxu0 0.0
    %984 = vmatmul.mubr.f32.gmra.mrb[0].mxu0 %v917
    %v985 = vpop.f32.mrb[0].mxu0
    %v986 = vadd.f32 0.0, %v985
    %v987 = vpop.f32.mrb[0].mxu0
    %988 = vdwg.mxu0
    %v989 = vadd.f32 %v876, %v986
    %v990 = vxor.u32 %v989, 2147483648
    %v991 = vmul.f32 %v990, 1.442695
    %v992 = vpow.pop %v991
    %v993 = vadd.f32 %v992, 1.0
    %v994 = vrcp.pop %v993
    %v995 = vmul.f32 1.0, %v994
    %v996 = vtanh.pop %v989
    %v997 = vmul.f32 %v995, 0.0
    %999 = vrot.lane.b32.xlu0 %v996, 32
    %v1000 = vpop.permute.xlu0 %999
    %v1002 = vmul.f32 %v995, %v1000
    %1004 = vrot.lane.b32.xlu0 %v1002, 32
    %v1005 = vpop.permute.xlu0 %1004
    %v1007 = vadd.f32 %v997, %v1005
    %v1008 = vtanh.pop %v1007
    %1010 = vrot.lane.b32.xlu0 %v1008, 32
    %v1011 = vpop.permute.xlu0 %1010
    %v1013 = vmul.f32 %v995, %v1011
    %v1016 = vunpack.c.l.s4 1983009808
    %v1017 = vunpack.c.0.s8 %v1016
    %v1018 = vlaneseq
    %v1019 = vshrl.u32 %v1018, 7
    %v1020 = vsub.s32 %v1017, %v1019
    %v1021 = vrot.slane %v1013, %v1020
    %1022 = vrot.lane.b32.xlu0 %v1021, 64
    %v1023 = vpop.permute.xlu0 %1022
    %v1024 = vsel %vm915, %v1023, 0
    %1026 = vmatprep.subr.mxu0 0.0
    %1027 = vmatpush1.msra.mxu0 %v911
    %1028 = vmatprep.subr.mxu0 0.0
    %1029 = vmatpush1.msra.mxu0 %v912
    %1030 = vmatprep.subr.mxu0 0.0
    %1031 = vmatpush1.msra.mxu0 %v913
    %1032 = vmatprep.subr.mxu0 0.0
    %1033 = vmatpush1.msra.mxu0 %v914
    %1034 = vmatprep.subr.mxu0 0.0
    %1035 = vmatpush1.msra.mxu0 0.0
    %1036 = vmatprep.subr.mxu0 0.0
    %1037 = vmatpush1.msra.mxu0 0.0
    %1038 = vmatprep.subr.mxu0 0.0
    %1039 = vmatpush1.msra.mxu0 0.0
    %1040 = vmatprep.subr.mxu0 0.0
    %1041 = vmatpush1.msra.mxu0 0.0
    %1042 = vmatprep.subr.mxu0 0.0
    %1043 = vmatpush1.msra.mxu0 0.0
    %1044 = vmatprep.subr.mxu0 0.0
    %1045 = vmatpush1.msra.mxu0 0.0
    %1046 = vmatprep.subr.mxu0 0.0
    %1047 = vmatpush1.msra.mxu0 0.0
    %1048 = vmatprep.subr.mxu0 0.0
    %1049 = vmatpush1.msra.mxu0 0.0
    %1050 = vmatprep.subr.mxu0 0.0
    %1051 = vmatpush1.msra.mxu0 0.0
    %1052 = vmatprep.subr.mxu0 0.0
    %1053 = vmatpush1.msra.mxu0 0.0
    %1054 = vmatprep.subr.mxu0 0.0
    %1055 = vmatpush1.msra.mxu0 0.0
    %1056 = vmatprep.subr.mxu0 0.0
    %1057 = vmatpush1.msra.mxu0 0.0
    %1058 = vmatprep.subr.mxu0 0.0
    %1059 = vmatpush1.msra.mxu0 0.0
    %1060 = vmatprep.subr.mxu0 0.0
    %1061 = vmatpush1.msra.mxu0 0.0
    %1062 = vmatprep.subr.mxu0 0.0
    %1063 = vmatpush1.msra.mxu0 0.0
    %1064 = vmatprep.subr.mxu0 0.0
    %1065 = vmatpush1.msra.mxu0 0.0
    %1066 = vmatprep.subr.mxu0 0.0
    %1067 = vmatpush1.msra.mxu0 0.0
    %1068 = vmatprep.subr.mxu0 0.0
    %1069 = vmatpush1.msra.mxu0 0.0
    %1070 = vmatprep.subr.mxu0 0.0
    %1071 = vmatpush1.msra.mxu0 0.0
    %1072 = vmatprep.subr.mxu0 0.0
    %1073 = vmatpush1.msra.mxu0 0.0
    %1074 = vmatprep.subr.mxu0 0.0
    %1075 = vmatpush1.msra.mxu0 0.0
    %1076 = vmatprep.subr.mxu0 0.0
    %1077 = vmatpush1.msra.mxu0 0.0
    %1078 = vmatprep.subr.mxu0 0.0
    %1079 = vmatpush1.msra.mxu0 0.0
    %1080 = vmatprep.subr.mxu0 0.0
    %1081 = vmatpush1.msra.mxu0 0.0
    %1082 = vmatprep.subr.mxu0 0.0
    %1083 = vmatpush1.msra.mxu0 0.0
    %1084 = vmatprep.subr.mxu0 0.0
    %1085 = vmatpush1.msra.mxu0 0.0
    %1086 = vmatprep.subr.mxu0 0.0
    %1087 = vmatpush1.msra.mxu0 0.0
    %1088 = vmatprep.subr.mxu0 0.0
    %1089 = vmatpush1.msra.mxu0 0.0
    %1090 = vmatprep.mubr.f32.mxu0 0.0
    %1091 = vmatmul.mubr.f32.gmra.mrb[0].mxu0 %v1024
    %v1092 = vpop.f32.mrb[0].mxu0
    %v1093 = vadd.f32 0.0, %v1092
    %v1094 = vpop.f32.mrb[0].mxu0
    %1095 = vdwg.mxu0
    %v1096 = vadd.f32 %v884, %v1093
    %v1097 = vxor.u32 %v1096, 2147483648
    %v1098 = vmul.f32 %v1097, 1.442695
    %v1099 = vpow.pop %v1098
    %v1100 = vadd.f32 %v1099, 1.0
    %v1101 = vrcp.pop %v1100
    %v1102 = vmul.f32 1.0, %v1101
    %v1103 = vtanh.pop %v1096
    %v1104 = vmul.f32 %v1102, %v1007
    %1106 = vrot.lane.b32.xlu0 %v1103, 32
    %v1107 = vpop.permute.xlu0 %1106
    %v1109 = vmul.f32 %v1102, %v1107
    %1111 = vrot.lane.b32.xlu0 %v1109, 32
    %v1112 = vpop.permute.xlu0 %1111
    %v1114 = vadd.f32 %v1104, %v1112
    %v1115 = vtanh.pop %v1114
    %1117 = vrot.lane.b32.xlu0 %v1115, 32
    %v1118 = vpop.permute.xlu0 %1117
    %v1120 = vmul.f32 %v1102, %v1118
    %v1123 = vunpack.c.l.s4 1983009808
    %v1124 = vunpack.c.0.s8 %v1123
    %v1125 = vlaneseq
    %v1126 = vshrl.u32 %v1125, 7
    %v1127 = vsub.s32 %v1124, %v1126
    %v1128 = vrot.slane %v1120, %v1127
    %1129 = vrot.lane.b32.xlu0 %v1128, 64
    %v1130 = vpop.permute.xlu0 %1129
    %v1131 = vsel %vm915, %v1130, 0
    %1133 = vmatprep.subr.mxu0 0.0
    %1134 = vmatpush1.msra.mxu0 %v911
    %1135 = vmatprep.subr.mxu0 0.0
    %1136 = vmatpush1.msra.mxu0 %v912
    %1137 = vmatprep.subr.mxu0 0.0
    %1138 = vmatpush1.msra.mxu0 %v913
    %1139 = vmatprep.subr.mxu0 0.0
    %1140 = vmatpush1.msra.mxu0 %v914
    %1141 = vmatprep.subr.mxu0 0.0
    %1142 = vmatpush1.msra.mxu0 0.0
    %1143 = vmatprep.subr.mxu0 0.0
    %1144 = vmatpush1.msra.mxu0 0.0
    %1145 = vmatprep.subr.mxu0 0.0
    %1146 = vmatpush1.msra.mxu0 0.0
    %1147 = vmatprep.subr.mxu0 0.0
    %1148 = vmatpush1.msra.mxu0 0.0
    %1149 = vmatprep.subr.mxu0 0.0
    %1150 = vmatpush1.msra.mxu0 0.0
    %1151 = vmatprep.subr.mxu0 0.0
    %1152 = vmatpush1.msra.mxu0 0.0
    %1153 = vmatprep.subr.mxu0 0.0
    %1154 = vmatpush1.msra.mxu0 0.0
    %1155 = vmatprep.subr.mxu0 0.0
    %1156 = vmatpush1.msra.mxu0 0.0
    %1157 = vmatprep.subr.mxu0 0.0
    %1158 = vmatpush1.msra.mxu0 0.0
    %1159 = vmatprep.subr.mxu0 0.0
    %1160 = vmatpush1.msra.mxu0 0.0
    %1161 = vmatprep.subr.mxu0 0.0
    %1162 = vmatpush1.msra.mxu0 0.0
    %1163 = vmatprep.subr.mxu0 0.0
    %1164 = vmatpush1.msra.mxu0 0.0
    %1165 = vmatprep.subr.mxu0 0.0
    %1166 = vmatpush1.msra.mxu0 0.0
    %1167 = vmatprep.subr.mxu0 0.0
    %1168 = vmatpush1.msra.mxu0 0.0
    %1169 = vmatprep.subr.mxu0 0.0
    %1170 = vmatpush1.msra.mxu0 0.0
    %1171 = vmatprep.subr.mxu0 0.0
    %1172 = vmatpush1.msra.mxu0 0.0
    %1173 = vmatprep.subr.mxu0 0.0
    %1174 = vmatpush1.msra.mxu0 0.0
    %1175 = vmatprep.subr.mxu0 0.0
    %1176 = vmatpush1.msra.mxu0 0.0
    %1177 = vmatprep.subr.mxu0 0.0
    %1178 = vmatpush1.msra.mxu0 0.0
    %1179 = vmatprep.subr.mxu0 0.0
    %1180 = vmatpush1.msra.mxu0 0.0
    %1181 = vmatprep.subr.mxu0 0.0
    %1182 = vmatpush1.msra.mxu0 0.0
    %1183 = vmatprep.subr.mxu0 0.0
    %1184 = vmatpush1.msra.mxu0 0.0
    %1185 = vmatprep.subr.mxu0 0.0
    %1186 = vmatpush1.msra.mxu0 0.0
    %1187 = vmatprep.subr.mxu0 0.0
    %1188 = vmatpush1.msra.mxu0 0.0
    %1189 = vmatprep.subr.mxu0 0.0
    %1190 = vmatpush1.msra.mxu0 0.0
    %1191 = vmatprep.subr.mxu0 0.0
    %1192 = vmatpush1.msra.mxu0 0.0
    %1193 = vmatprep.subr.mxu0 0.0
    %1194 = vmatpush1.msra.mxu0 0.0
    %1195 = vmatprep.subr.mxu0 0.0
    %1196 = vmatpush1.msra.mxu0 0.0
    %1197 = vmatprep.mubr.f32.mxu0 0.0
    %1198 = vmatmul.mubr.f32.gmra.mrb[0].mxu0 %v1131
    %v1199 = vpop.f32.mrb[0].mxu0
    %v1200 = vadd.f32 0.0, %v1199
    %v1201 = vpop.f32.mrb[0].mxu0
    %1202 = vdwg.mxu0
    %v1203 = vadd.f32 %v883, %v1200
    %v1204 = vxor.u32 %v1203, 2147483648
    %v1205 = vmul.f32 %v1204, 1.442695
    %v1206 = vpow.pop %v1205
    %v1207 = vadd.f32 %v1206, 1.0
    %v1208 = vrcp.pop %v1207
    %v1209 = vmul.f32 1.0, %v1208
    %v1210 = vtanh.pop %v1203
    %v1211 = vmul.f32 %v1209, %v1114
    %1213 = vrot.lane.b32.xlu0 %v1210, 32
    %v1214 = vpop.permute.xlu0 %1213
    %v1216 = vmul.f32 %v1209, %v1214
    %1218 = vrot.lane.b32.xlu0 %v1216, 32
    %v1219 = vpop.permute.xlu0 %1218
    %v1221 = vadd.f32 %v1211, %v1219
    %v1222 = vtanh.pop %v1221
    %1224 = vrot.lane.b32.xlu0 %v1222, 32
    %v1225 = vpop.permute.xlu0 %1224
    %v1227 = vmul.f32 %v1209, %v1225
    %v1230 = vunpack.c.l.s4 1983009808
    %v1231 = vunpack.c.0.s8 %v1230
    %v1232 = vlaneseq
    %v1233 = vshrl.u32 %v1232, 7
    %v1234 = vsub.s32 %v1231, %v1233
    %v1235 = vrot.slane %v1227, %v1234
    %1236 = vrot.lane.b32.xlu0 %v1235, 64
    %v1237 = vpop.permute.xlu0 %1236
    %v1238 = vsel %vm915, %v1237, 0
    %1240 = vmatprep.subr.mxu0 0.0
    %1241 = vmatpush1.msra.mxu0 %v911
    %1242 = vmatprep.subr.mxu0 0.0
    %1243 = vmatpush1.msra.mxu0 %v912
    %1244 = vmatprep.subr.mxu0 0.0
    %1245 = vmatpush1.msra.mxu0 %v913
    %1246 = vmatprep.subr.mxu0 0.0
    %1247 = vmatpush1.msra.mxu0 %v914
    %1248 = vmatprep.subr.mxu0 0.0
    %1249 = vmatpush1.msra.mxu0 0.0
    %1250 = vmatprep.subr.mxu0 0.0
    %1251 = vmatpush1.msra.mxu0 0.0
    %1252 = vmatprep.subr.mxu0 0.0
    %1253 = vmatpush1.msra.mxu0 0.0
    %1254 = vmatprep.subr.mxu0 0.0
    %1255 = vmatpush1.msra.mxu0 0.0
    %1256 = vmatprep.subr.mxu0 0.0
    %1257 = vmatpush1.msra.mxu0 0.0
    %1258 = vmatprep.subr.mxu0 0.0
    %1259 = vmatpush1.msra.mxu0 0.0
    %1260 = vmatprep.subr.mxu0 0.0
    %1261 = vmatpush1.msra.mxu0 0.0
    %1262 = vmatprep.subr.mxu0 0.0
    %1263 = vmatpush1.msra.mxu0 0.0
    %1264 = vmatprep.subr.mxu0 0.0
    %1265 = vmatpush1.msra.mxu0 0.0
    %1266 = vmatprep.subr.mxu0 0.0
    %1267 = vmatpush1.msra.mxu0 0.0
    %1268 = vmatprep.subr.mxu0 0.0
    %1269 = vmatpush1.msra.mxu0 0.0
    %1270 = vmatprep.subr.mxu0 0.0
    %1271 = vmatpush1.msra.mxu0 0.0
    %1272 = vmatprep.subr.mxu0 0.0
    %1273 = vmatpush1.msra.mxu0 0.0
    %1274 = vmatprep.subr.mxu0 0.0
    %1275 = vmatpush1.msra.mxu0 0.0
    %1276 = vmatprep.subr.mxu0 0.0
    %1277 = vmatpush1.msra.mxu0 0.0
    %1278 = vmatprep.subr.mxu0 0.0
    %1279 = vmatpush1.msra.mxu0 0.0
    %1280 = vmatprep.subr.mxu0 0.0
    %1281 = vmatpush1.msra.mxu0 0.0
    %1282 = vmatprep.subr.mxu0 0.0
    %1283 = vmatpush1.msra.mxu0 0.0
    %1284 = vmatprep.subr.mxu0 0.0
    %1285 = vmatpush1.msra.mxu0 0.0
    %1286 = vmatprep.subr.mxu0 0.0
    %1287 = vmatpush1.msra.mxu0 0.0
    %1288 = vmatprep.subr.mxu0 0.0
    %1289 = vmatpush1.msra.mxu0 0.0
    %1290 = vmatprep.subr.mxu0 0.0
    %1291 = vmatpush1.msra.mxu0 0.0
    %1292 = vmatprep.subr.mxu0 0.0
    %1293 = vmatpush1.msra.mxu0 0.0
    %1294 = vmatprep.subr.mxu0 0.0
    %1295 = vmatpush1.msra.mxu0 0.0
    %1296 = vmatprep.subr.mxu0 0.0
    %1297 = vmatpush1.msra.mxu0 0.0
    %1298 = vmatprep.subr.mxu0 0.0
    %1299 = vmatpush1.msra.mxu0 0.0
    %1300 = vmatprep.subr.mxu0 0.0
    %1301 = vmatpush1.msra.mxu0 0.0
    %1302 = vmatprep.subr.mxu0 0.0
    %1303 = vmatpush1.msra.mxu0 0.0
    %1304 = vmatprep.mubr.f32.mxu0 0.0
    %1305 = vmatmul.mubr.f32.gmra.mrb[0].mxu0 %v1238
    %v1306 = vpop.f32.mrb[0].mxu0
    %v1307 = vadd.f32 0.0, %v1306
    %v1308 = vpop.f32.mrb[0].mxu0
    %1309 = vdwg.mxu0
    %v1310 = vadd.f32 %v885, %v1307
    %v1311 = vxor.u32 %v1310, 2147483648
    %v1312 = vmul.f32 %v1311, 1.442695
    %v1313 = vpow.pop %v1312
    %v1314 = vadd.f32 %v1313, 1.0
    %v1315 = vrcp.pop %v1314
    %v1316 = vmul.f32 1.0, %v1315
    %v1317 = vtanh.pop %v1310
    %v1318 = vmul.f32 %v1316, %v1221
    %1320 = vrot.lane.b32.xlu0 %v1317, 32
    %v1321 = vpop.permute.xlu0 %1320
    %v1323 = vmul.f32 %v1316, %v1321
    %1325 = vrot.lane.b32.xlu0 %v1323, 32
    %v1326 = vpop.permute.xlu0 %1325
    %v1328 = vadd.f32 %v1318, %v1326
    %v1329 = vtanh.pop %v1328
    %1331 = vrot.lane.b32.xlu0 %v1329, 32
    %v1332 = vpop.permute.xlu0 %1331
    %v1334 = vmul.f32 %v1316, %v1332
    %v1337 = vunpack.c.l.s4 1983009808
    %v1338 = vunpack.c.0.s8 %v1337
    %v1339 = vlaneseq
    %v1340 = vshrl.u32 %v1339, 7
    %v1341 = vsub.s32 %v1338, %v1340
    %v1342 = vrot.slane %v1334, %v1341
    %1343 = vrot.lane.b32.xlu0 %v1342, 64
    %v1344 = vpop.permute.xlu0 %1343
    %v1345 = vsel %vm915, %v1344, 0
    %1347 = vmatprep.subr.mxu0 0.0
    %1348 = vmatpush1.msra.mxu0 %v911
    %1349 = vmatprep.subr.mxu0 0.0
    %1350 = vmatpush1.msra.mxu0 %v912
    %1351 = vmatprep.subr.mxu0 0.0
    %1352 = vmatpush1.msra.mxu0 %v913
    %1353 = vmatprep.subr.mxu0 0.0
    %1354 = vmatpush1.msra.mxu0 %v914
    %1355 = vmatprep.subr.mxu0 0.0
    %1356 = vmatpush1.msra.mxu0 0.0
    %1357 = vmatprep.subr.mxu0 0.0
    %1358 = vmatpush1.msra.mxu0 0.0
    %1359 = vmatprep.subr.mxu0 0.0
    %1360 = vmatpush1.msra.mxu0 0.0
    %1361 = vmatprep.subr.mxu0 0.0
    %1362 = vmatpush1.msra.mxu0 0.0
    %1363 = vmatprep.subr.mxu0 0.0
    %1364 = vmatpush1.msra.mxu0 0.0
    %1365 = vmatprep.subr.mxu0 0.0
    %1366 = vmatpush1.msra.mxu0 0.0
    %1367 = vmatprep.subr.mxu0 0.0
    %1368 = vmatpush1.msra.mxu0 0.0
    %1369 = vmatprep.subr.mxu0 0.0
    %1370 = vmatpush1.msra.mxu0 0.0
    %1371 = vmatprep.subr.mxu0 0.0
    %1372 = vmatpush1.msra.mxu0 0.0
    %1373 = vmatprep.subr.mxu0 0.0
    %1374 = vmatpush1.msra.mxu0 0.0
    %1375 = vmatprep.subr.mxu0 0.0
    %1376 = vmatpush1.msra.mxu0 0.0
    %1377 = vmatprep.subr.mxu0 0.0
    %1378 = vmatpush1.msra.mxu0 0.0
    %1379 = vmatprep.subr.mxu0 0.0
    %1380 = vmatpush1.msra.mxu0 0.0
    %1381 = vmatprep.subr.mxu0 0.0
    %1382 = vmatpush1.msra.mxu0 0.0
    %1383 = vmatprep.subr.mxu0 0.0
    %1384 = vmatpush1.msra.mxu0 0.0
    %1385 = vmatprep.subr.mxu0 0.0
    %1386 = vmatpush1.msra.mxu0 0.0
    %1387 = vmatprep.subr.mxu0 0.0
    %1388 = vmatpush1.msra.mxu0 0.0
    %1389 = vmatprep.subr.mxu0 0.0
    %1390 = vmatpush1.msra.mxu0 0.0
    %1391 = vmatprep.subr.mxu0 0.0
    %1392 = vmatpush1.msra.mxu0 0.0
    %1393 = vmatprep.subr.mxu0 0.0
    %1394 = vmatpush1.msra.mxu0 0.0
    %1395 = vmatprep.subr.mxu0 0.0
    %1396 = vmatpush1.msra.mxu0 0.0
    %1397 = vmatprep.subr.mxu0 0.0
    %1398 = vmatpush1.msra.mxu0 0.0
    %1399 = vmatprep.subr.mxu0 0.0
    %1400 = vmatpush1.msra.mxu0 0.0
    %1401 = vmatprep.subr.mxu0 0.0
    %1402 = vmatpush1.msra.mxu0 0.0
    %1403 = vmatprep.subr.mxu0 0.0
    %1404 = vmatpush1.msra.mxu0 0.0
    %1405 = vmatprep.subr.mxu0 0.0
    %1406 = vmatpush1.msra.mxu0 0.0
    %1407 = vmatprep.subr.mxu0 0.0
    %1408 = vmatpush1.msra.mxu0 0.0
    %1409 = vmatprep.subr.mxu0 0.0
    %1410 = vmatpush1.msra.mxu0 0.0
    %1411 = vmatprep.mubr.f32.mxu0 0.0
    %1412 = vmatmul.mubr.f32.gmra.mrb[0].mxu0 %v1345
    %v1413 = vpop.f32.mrb[0].mxu0
    %v1414 = vadd.f32 0.0, %v1413
    %v1415 = vpop.f32.mrb[0].mxu0
    %1416 = vdwg.mxu0
    %v1417 = vadd.f32 %v893, %v1414
    %v1418 = vxor.u32 %v1417, 2147483648
    %v1419 = vmul.f32 %v1418, 1.442695
    %v1420 = vpow.pop %v1419
    %v1421 = vadd.f32 %v1420, 1.0
    %v1422 = vrcp.pop %v1421
    %v1423 = vmul.f32 1.0, %v1422
    %v1424 = vtanh.pop %v1417
    %v1425 = vmul.f32 %v1423, %v1328
    %1427 = vrot.lane.b32.xlu0 %v1424, 32
    %v1428 = vpop.permute.xlu0 %1427
    %v1430 = vmul.f32 %v1423, %v1428
    %1432 = vrot.lane.b32.xlu0 %v1430, 32
    %v1433 = vpop.permute.xlu0 %1432
    %v1435 = vadd.f32 %v1425, %v1433
    %v1436 = vtanh.pop %v1435
    %1438 = vrot.lane.b32.xlu0 %v1436, 32
    %v1439 = vpop.permute.xlu0 %1438
    %v1441 = vmul.f32 %v1423, %v1439
    %v1444 = vunpack.c.l.s4 1983009808
    %v1445 = vunpack.c.0.s8 %v1444
    %v1446 = vlaneseq
    %v1447 = vshrl.u32 %v1446, 7
    %v1448 = vsub.s32 %v1445, %v1447
    %v1449 = vrot.slane %v1441, %v1448
    %1450 = vrot.lane.b32.xlu0 %v1449, 64
    %v1451 = vpop.permute.xlu0 %1450
    %v1452 = vsel %vm915, %v1451, 0
    %1454 = vmatprep.subr.mxu0 0.0
    %1455 = vmatpush1.msra.mxu0 %v911
    %1456 = vmatprep.subr.mxu0 0.0
    %1457 = vmatpush1.msra.mxu0 %v912
    %1458 = vmatprep.subr.mxu0 0.0
    %1459 = vmatpush1.msra.mxu0 %v913
    %1460 = vmatprep.subr.mxu0 0.0
    %1461 = vmatpush1.msra.mxu0 %v914
    %1462 = vmatprep.subr.mxu0 0.0
    %1463 = vmatpush1.msra.mxu0 0.0
    %1464 = vmatprep.subr.mxu0 0.0
    %1465 = vmatpush1.msra.mxu0 0.0
    %1466 = vmatprep.subr.mxu0 0.0
    %1467 = vmatpush1.msra.mxu0 0.0
    %1468 = vmatprep.subr.mxu0 0.0
    %1469 = vmatpush1.msra.mxu0 0.0
    %1470 = vmatprep.subr.mxu0 0.0
    %1471 = vmatpush1.msra.mxu0 0.0
    %1472 = vmatprep.subr.mxu0 0.0
    %1473 = vmatpush1.msra.mxu0 0.0
    %1474 = vmatprep.subr.mxu0 0.0
    %1475 = vmatpush1.msra.mxu0 0.0
    %1476 = vmatprep.subr.mxu0 0.0
    %1477 = vmatpush1.msra.mxu0 0.0
    %1478 = vmatprep.subr.mxu0 0.0
    %1479 = vmatpush1.msra.mxu0 0.0
    %1480 = vmatprep.subr.mxu0 0.0
    %1481 = vmatpush1.msra.mxu0 0.0
    %1482 = vmatprep.subr.mxu0 0.0
    %1483 = vmatpush1.msra.mxu0 0.0
    %1484 = vmatprep.subr.mxu0 0.0
    %1485 = vmatpush1.msra.mxu0 0.0
    %1486 = vmatprep.subr.mxu0 0.0
    %1487 = vmatpush1.msra.mxu0 0.0
    %1488 = vmatprep.subr.mxu0 0.0
    %1489 = vmatpush1.msra.mxu0 0.0
    %1490 = vmatprep.subr.mxu0 0.0
    %1491 = vmatpush1.msra.mxu0 0.0
    %1492 = vmatprep.subr.mxu0 0.0
    %1493 = vmatpush1.msra.mxu0 0.0
    %1494 = vmatprep.subr.mxu0 0.0
    %1495 = vmatpush1.msra.mxu0 0.0
    %1496 = vmatprep.subr.mxu0 0.0
    %1497 = vmatpush1.msra.mxu0 0.0
    %1498 = vmatprep.subr.mxu0 0.0
    %1499 = vmatpush1.msra.mxu0 0.0
    %1500 = vmatprep.subr.mxu0 0.0
    %1501 = vmatpush1.msra.mxu0 0.0
    %1502 = vmatprep.subr.mxu0 0.0
    %1503 = vmatpush1.msra.mxu0 0.0
    %1504 = vmatprep.subr.mxu0 0.0
    %1505 = vmatpush1.msra.mxu0 0.0
    %1506 = vmatprep.subr.mxu0 0.0
    %1507 = vmatpush1.msra.mxu0 0.0
    %1508 = vmatprep.subr.mxu0 0.0
    %1509 = vmatpush1.msra.mxu0 0.0
    %1510 = vmatprep.subr.mxu0 0.0
    %1511 = vmatpush1.msra.mxu0 0.0
    %1512 = vmatprep.subr.mxu0 0.0
    %1513 = vmatpush1.msra.mxu0 0.0
    %1514 = vmatprep.subr.mxu0 0.0
    %1515 = vmatpush1.msra.mxu0 0.0
    %1516 = vmatprep.subr.mxu0 0.0
    %1517 = vmatpush1.msra.mxu0 0.0
    %1518 = vmatprep.mubr.f32.mxu0 0.0
    %1519 = vmatmul.mubr.f32.gmra.mrb[0].mxu0 %v1452
    %v1520 = vpop.f32.mrb[0].mxu0
    %v1521 = vadd.f32 0.0, %v1520
    %v1522 = vpop.f32.mrb[0].mxu0
    %1523 = vdwg.mxu0
    %v1524 = vadd.f32 %v901, %v1521
    %v1525 = vxor.u32 %v1524, 2147483648
    %v1526 = vmul.f32 %v1525, 1.442695
    %v1527 = vpow.pop %v1526
    %v1528 = vadd.f32 %v1527, 1.0
    %v1529 = vrcp.pop %v1528
    %v1530 = vmul.f32 1.0, %v1529
    %v1531 = vtanh.pop %v1524
    %v1532 = vmul.f32 %v1530, %v1435
    %1534 = vrot.lane.b32.xlu0 %v1531, 32
    %v1535 = vpop.permute.xlu0 %1534
    %v1537 = vmul.f32 %v1530, %v1535
    %1539 = vrot.lane.b32.xlu0 %v1537, 32
    %v1540 = vpop.permute.xlu0 %1539
    %v1542 = vadd.f32 %v1532, %v1540
    %v1543 = vtanh.pop %v1542
    %1545 = vrot.lane.b32.xlu0 %v1543, 32
    %v1546 = vpop.permute.xlu0 %1545
    %v1548 = vmul.f32 %v1530, %v1546
    %v1551 = vunpack.c.l.s4 1983009808
    %v1552 = vunpack.c.0.s8 %v1551
    %v1553 = vlaneseq
    %v1554 = vshrl.u32 %v1553, 7
    %v1555 = vsub.s32 %v1552, %v1554
    %v1556 = vrot.slane %v1548, %v1555
    %1557 = vrot.lane.b32.xlu0 %v1556, 64
    %v1558 = vpop.permute.xlu0 %1557
    %v1559 = vsel %vm915, %v1558, 0
    %1561 = vmatprep.subr.mxu0 0.0
    %1562 = vmatpush1.msra.mxu0 %v911
    %1563 = vmatprep.subr.mxu0 0.0
    %1564 = vmatpush1.msra.mxu0 %v912
    %1565 = vmatprep.subr.mxu0 0.0
    %1566 = vmatpush1.msra.mxu0 %v913
    %1567 = vmatprep.subr.mxu0 0.0
    %1568 = vmatpush1.msra.mxu0 %v914
    %1569 = vmatprep.subr.mxu0 0.0
    %1570 = vmatpush1.msra.mxu0 0.0
    %1571 = vmatprep.subr.mxu0 0.0
    %1572 = vmatpush1.msra.mxu0 0.0
    %1573 = vmatprep.subr.mxu0 0.0
    %1574 = vmatpush1.msra.mxu0 0.0
    %1575 = vmatprep.subr.mxu0 0.0
    %1576 = vmatpush1.msra.mxu0 0.0
    %1577 = vmatprep.subr.mxu0 0.0
    %1578 = vmatpush1.msra.mxu0 0.0
    %1579 = vmatprep.subr.mxu0 0.0
    %1580 = vmatpush1.msra.mxu0 0.0
    %1581 = vmatprep.subr.mxu0 0.0
    %1582 = vmatpush1.msra.mxu0 0.0
    %1583 = vmatprep.subr.mxu0 0.0
    %1584 = vmatpush1.msra.mxu0 0.0
    %1585 = vmatprep.subr.mxu0 0.0
    %1586 = vmatpush1.msra.mxu0 0.0
    %1587 = vmatprep.subr.mxu0 0.0
    %1588 = vmatpush1.msra.mxu0 0.0
    %1589 = vmatprep.subr.mxu0 0.0
    %1590 = vmatpush1.msra.mxu0 0.0
    %1591 = vmatprep.subr.mxu0 0.0
    %1592 = vmatpush1.msra.mxu0 0.0
    %1593 = vmatprep.subr.mxu0 0.0
    %1594 = vmatpush1.msra.mxu0 0.0
    %1595 = vmatprep.subr.mxu0 0.0
    %1596 = vmatpush1.msra.mxu0 0.0
    %1597 = vmatprep.subr.mxu0 0.0
    %1598 = vmatpush1.msra.mxu0 0.0
    %1599 = vmatprep.subr.mxu0 0.0
    %1600 = vmatpush1.msra.mxu0 0.0
    %1601 = vmatprep.subr.mxu0 0.0
    %1602 = vmatpush1.msra.mxu0 0.0
    %1603 = vmatprep.subr.mxu0 0.0
    %1604 = vmatpush1.msra.mxu0 0.0
    %1605 = vmatprep.subr.mxu0 0.0
    %1606 = vmatpush1.msra.mxu0 0.0
    %1607 = vmatprep.subr.mxu0 0.0
    %1608 = vmatpush1.msra.mxu0 0.0
    %1609 = vmatprep.subr.mxu0 0.0
    %1610 = vmatpush1.msra.mxu0 0.0
    %1611 = vmatprep.subr.mxu0 0.0
    %1612 = vmatpush1.msra.mxu0 0.0
    %1613 = vmatprep.subr.mxu0 0.0
    %1614 = vmatpush1.msra.mxu0 0.0
    %1615 = vmatprep.subr.mxu0 0.0
    %1616 = vmatpush1.msra.mxu0 0.0
    %1617 = vmatprep.subr.mxu0 0.0
    %1618 = vmatpush1.msra.mxu0 0.0
    %1619 = vmatprep.subr.mxu0 0.0
    %1620 = vmatpush1.msra.mxu0 0.0
    %1621 = vmatprep.subr.mxu0 0.0
    %1622 = vmatpush1.msra.mxu0 0.0
    %1623 = vmatprep.subr.mxu0 0.0
    %1624 = vmatpush1.msra.mxu0 0.0
    %1625 = vmatprep.mubr.f32.mxu0 0.0
    %1626 = vmatmul.mubr.f32.gmra.mrb[0].mxu0 %v1559
    %v1627 = vpop.f32.mrb[0].mxu0
    %v1628 = vadd.f32 0.0, %v1627
    %v1629 = vpop.f32.mrb[0].mxu0
    %1630 = vdwg.mxu0
    %v1631 = vadd.f32 %v900, %v1628
    %v1632 = vxor.u32 %v1631, 2147483648
    %v1633 = vmul.f32 %v1632, 1.442695
    %v1634 = vpow.pop %v1633
    %v1635 = vadd.f32 %v1634, 1.0
    %v1636 = vrcp.pop %v1635
    %v1637 = vmul.f32 1.0, %v1636
    %v1638 = vtanh.pop %v1631
    %v1639 = vmul.f32 %v1637, %v1542
    %1641 = vrot.lane.b32.xlu0 %v1638, 32
    %v1642 = vpop.permute.xlu0 %1641
    %v1644 = vmul.f32 %v1637, %v1642
    %1646 = vrot.lane.b32.xlu0 %v1644, 32
    %v1647 = vpop.permute.xlu0 %1646
    %v1649 = vadd.f32 %v1639, %v1647
    %v1650 = vtanh.pop %v1649
    %1652 = vrot.lane.b32.xlu0 %v1650, 32
    %v1653 = vpop.permute.xlu0 %1652
    %v1655 = vmul.f32 %v1637, %v1653
    %v1658 = vunpack.c.l.s4 1983009808
    %v1659 = vunpack.c.0.s8 %v1658
    %v1660 = vlaneseq
    %v1661 = vshrl.u32 %v1660, 7
    %v1662 = vsub.s32 %v1659, %v1661
    %v1663 = vrot.slane %v1655, %v1662
    %1664 = vrot.lane.b32.xlu0 %v1663, 64
    %v1665 = vpop.permute.xlu0 %1664
    %v1666 = vsel %vm915, %v1665, 0
    %1668 = vmatprep.subr.mxu0 0.0
    %1669 = vmatpush1.msra.mxu0 %v911
    %1670 = vmatprep.subr.mxu0 0.0
    %1671 = vmatpush1.msra.mxu0 %v912
    %1672 = vmatprep.subr.mxu0 0.0
    %1673 = vmatpush1.msra.mxu0 %v913
    %1674 = vmatprep.subr.mxu0 0.0
    %1675 = vmatpush1.msra.mxu0 %v914
    %1676 = vmatprep.subr.mxu0 0.0
    %1677 = vmatpush1.msra.mxu0 0.0
    %1678 = vmatprep.subr.mxu0 0.0
    %1679 = vmatpush1.msra.mxu0 0.0
    %1680 = vmatprep.subr.mxu0 0.0
    %1681 = vmatpush1.msra.mxu0 0.0
    %1682 = vmatprep.subr.mxu0 0.0
    %1683 = vmatpush1.msra.mxu0 0.0
    %1684 = vmatprep.subr.mxu0 0.0
    %1685 = vmatpush1.msra.mxu0 0.0
    %1686 = vmatprep.subr.mxu0 0.0
    %1687 = vmatpush1.msra.mxu0 0.0
    %1688 = vmatprep.subr.mxu0 0.0
    %1689 = vmatpush1.msra.mxu0 0.0
    %1690 = vmatprep.subr.mxu0 0.0
    %1691 = vmatpush1.msra.mxu0 0.0
    %1692 = vmatprep.subr.mxu0 0.0
    %1693 = vmatpush1.msra.mxu0 0.0
    %1694 = vmatprep.subr.mxu0 0.0
    %1695 = vmatpush1.msra.mxu0 0.0
    %1696 = vmatprep.subr.mxu0 0.0
    %1697 = vmatpush1.msra.mxu0 0.0
    %1698 = vmatprep.subr.mxu0 0.0
    %1699 = vmatpush1.msra.mxu0 0.0
    %1700 = vmatprep.subr.mxu0 0.0
    %1701 = vmatpush1.msra.mxu0 0.0
    %1702 = vmatprep.subr.mxu0 0.0
    %1703 = vmatpush1.msra.mxu0 0.0
    %1704 = vmatprep.subr.mxu0 0.0
    %1705 = vmatpush1.msra.mxu0 0.0
    %1706 = vmatprep.subr.mxu0 0.0
    %1707 = vmatpush1.msra.mxu0 0.0
    %1708 = vmatprep.subr.mxu0 0.0
    %1709 = vmatpush1.msra.mxu0 0.0
    %1710 = vmatprep.subr.mxu0 0.0
    %1711 = vmatpush1.msra.mxu0 0.0
    %1712 = vmatprep.subr.mxu0 0.0
    %1713 = vmatpush1.msra.mxu0 0.0
    %1714 = vmatprep.subr.mxu0 0.0
    %1715 = vmatpush1.msra.mxu0 0.0
    %1716 = vmatprep.subr.mxu0 0.0
    %1717 = vmatpush1.msra.mxu0 0.0
    %1718 = vmatprep.subr.mxu0 0.0
    %1719 = vmatpush1.msra.mxu0 0.0
    %1720 = vmatprep.subr.mxu0 0.0
    %1721 = vmatpush1.msra.mxu0 0.0
    %1722 = vmatprep.subr.mxu0 0.0
    %1723 = vmatpush1.msra.mxu0 0.0
    %1724 = vmatprep.subr.mxu0 0.0
    %1725 = vmatpush1.msra.mxu0 0.0
    %1726 = vmatprep.subr.mxu0 0.0
    %1727 = vmatpush1.msra.mxu0 0.0
    %1728 = vmatprep.subr.mxu0 0.0
    %1729 = vmatpush1.msra.mxu0 0.0
    %1730 = vmatprep.subr.mxu0 0.0
    %1731 = vmatpush1.msra.mxu0 0.0
    %1732 = vmatprep.mubr.f32.mxu0 0.0
    %1733 = vmatmul.mubr.f32.gmra.mrb[0].mxu0 %v1666
    %v1734 = vpop.f32.mrb[0].mxu0
    %v1735 = vadd.f32 0.0, %v1734
    %v1736 = vpop.f32.mrb[0].mxu0
    %1737 = vdwg.mxu0
    %v1738 = vadd.f32 %v902, %v1735
    %v1739 = vxor.u32 %v1738, 2147483648
    %v1740 = vmul.f32 %v1739, 1.442695
    %v1741 = vpow.pop %v1740
    %v1742 = vadd.f32 %v1741, 1.0
    %v1743 = vrcp.pop %v1742
    %v1744 = vmul.f32 1.0, %v1743
    %v1745 = vtanh.pop %v1738
    %v1746 = vmul.f32 %v1744, %v1649
    %1748 = vrot.lane.b32.xlu0 %v1745, 32
    %v1749 = vpop.permute.xlu0 %1748
    %v1751 = vmul.f32 %v1744, %v1749
    %1753 = vrot.lane.b32.xlu0 %v1751, 32
    %v1754 = vpop.permute.xlu0 %1753
    %v1756 = vadd.f32 %v1746, %v1754
    %v1757 = vtanh.pop %v1756
    %1759 = vrot.lane.b32.xlu0 %v1757, 32
    %v1760 = vpop.permute.xlu0 %1759
    %v1762 = vmul.f32 %v1744, %v1760
    %v1763 = vld [vmem:[%s8] sm:$0xff]
    %v1764 = vld [vmem:[%s8 + $0x8] sm:$0xff]
    %v1765 = vld [vmem:[%s8 + $0x10] sm:$0xff]
    %v1766 = vld [vmem:[%s8 + $0x18] sm:$0xff]
    %v1767 = vld [vmem:[%s9] sm:$0x1]
    %v1769 = vlaneseq
    %v1770 = vshrl.u32 %v1769, 7
    %v1771 = vsub.s32 0, %v1770
    %v1772 = vrot.slane %v1767, %v1771
    %v1776 = vunpack.c.l.s4 1983009808
    %v1777 = vunpack.c.0.s8 %v1776
    %v1778 = vlaneseq
    %v1779 = vshrl.u32 %v1778, 7
    %v1780 = vsub.s32 %v1777, %v1779
    %v1781 = vrot.slane %v1762, %v1780
    %1782 = vrot.lane.b32.xlu0 %v1781, 64
    %v1783 = vpop.permute.xlu0 %1782
    %v1784 = vsel %vm915, %v1783, 0
    %1786 = vmatprep.subr.mxu0 0.0
    %1787 = vmatpush1.msra.mxu0 %v1763
    %1788 = vmatprep.subr.mxu0 0.0
    %1789 = vmatpush1.msra.mxu0 %v1764
    %1790 = vmatprep.subr.mxu0 0.0
    %1791 = vmatpush1.msra.mxu0 %v1765
    %1792 = vmatprep.subr.mxu0 0.0
    %1793 = vmatpush1.msra.mxu0 %v1766
    %1794 = vmatprep.subr.mxu0 0.0
    %1795 = vmatpush1.msra.mxu0 0.0
    %1796 = vmatprep.subr.mxu0 0.0
    %1797 = vmatpush1.msra.mxu0 0.0
    %1798 = vmatprep.subr.mxu0 0.0
    %1799 = vmatpush1.msra.mxu0 0.0
    %1800 = vmatprep.subr.mxu0 0.0
    %1801 = vmatpush1.msra.mxu0 0.0
    %1802 = vmatprep.subr.mxu0 0.0
    %1803 = vmatpush1.msra.mxu0 0.0
    %1804 = vmatprep.subr.mxu0 0.0
    %1805 = vmatpush1.msra.mxu0 0.0
    %1806 = vmatprep.subr.mxu0 0.0
    %1807 = vmatpush1.msra.mxu0 0.0
    %1808 = vmatprep.subr.mxu0 0.0
    %1809 = vmatpush1.msra.mxu0 0.0
    %1810 = vmatprep.subr.mxu0 0.0
    %1811 = vmatpush1.msra.mxu0 0.0
    %1812 = vmatprep.subr.mxu0 0.0
    %1813 = vmatpush1.msra.mxu0 0.0
    %1814 = vmatprep.subr.mxu0 0.0
    %1815 = vmatpush1.msra.mxu0 0.0
    %1816 = vmatprep.subr.mxu0 0.0
    %1817 = vmatpush1.msra.mxu0 0.0
    %1818 = vmatprep.subr.mxu0 0.0
    %1819 = vmatpush1.msra.mxu0 0.0
    %1820 = vmatprep.subr.mxu0 0.0
    %1821 = vmatpush1.msra.mxu0 0.0
    %1822 = vmatprep.subr.mxu0 0.0
    %1823 = vmatpush1.msra.mxu0 0.0
    %1824 = vmatprep.subr.mxu0 0.0
    %1825 = vmatpush1.msra.mxu0 0.0
    %1826 = vmatprep.subr.mxu0 0.0
    %1827 = vmatpush1.msra.mxu0 0.0
    %1828 = vmatprep.subr.mxu0 0.0
    %1829 = vmatpush1.msra.mxu0 0.0
    %1830 = vmatprep.subr.mxu0 0.0
    %1831 = vmatpush1.msra.mxu0 0.0
    %1832 = vmatprep.subr.mxu0 0.0
    %1833 = vmatpush1.msra.mxu0 0.0
    %1834 = vmatprep.subr.mxu0 0.0
    %1835 = vmatpush1.msra.mxu0 0.0
    %1836 = vmatprep.subr.mxu0 0.0
    %1837 = vmatpush1.msra.mxu0 0.0
    %1838 = vmatprep.subr.mxu0 0.0
    %1839 = vmatpush1.msra.mxu0 0.0
    %1840 = vmatprep.subr.mxu0 0.0
    %1841 = vmatpush1.msra.mxu0 0.0
    %1842 = vmatprep.subr.mxu0 0.0
    %1843 = vmatpush1.msra.mxu0 0.0
    %1844 = vmatprep.subr.mxu0 0.0
    %1845 = vmatpush1.msra.mxu0 0.0
    %1846 = vmatprep.subr.mxu0 0.0
    %1847 = vmatpush1.msra.mxu0 0.0
    %1848 = vmatprep.subr.mxu0 0.0
    %1849 = vmatpush1.msra.mxu0 0.0
    %1850 = vmatprep.mubr.f32.mxu0 0.0
    %1851 = vmatmul.mubr.f32.gmra.mrb[0].mxu0 %v1784
    %v1852 = vpop.f32.mrb[0].mxu0
    %v1853 = vadd.f32 %v1772, %v1852
    %v1854 = vpop.f32.mrb[0].mxu0
    %1855 = vdwg.mxu0
    %vm1856 = vcmask 58368
    %1857 = vst.msk [vmem:[#allocation2] sm:$0x3] %vm1856, %v1853
    // Predicated region
    $region42: #{tpu_custom_call.1} parent=1 // pred_check
      _
    $region43: #{tpu_custom_call.1} parent=1 // pred_check_branch
      %1859 = sbr.rel (0) target = $region45
    $region44: #{tpu_custom_call.1} parent=1 // pred_region
      %s1861 = ssub.s32 32, 32
      %1862 = vsyncadd [#allocation3], %s1861
      %s1864 = sshll.u32 [#allocation2], 4
      %s1865 = int_to_ptr.vmem [resolvable:$true] %s1864
      %1867 = dma.vmem_to_hbm [thread:$0]  %s1865, 32, %s10, [#allocation3]
    $region45: #{tpu_custom_call.1} parent=1 // pred_fallthru
      _
    // Predicated region
    $region46: #{tpu_custom_call.1} parent=1 // pred_check
      _
    $region47: #{tpu_custom_call.1} parent=1 // pred_check_branch
      %1869 = sbr.rel (0) target = $region49
    $region48: #{tpu_custom_call.1} parent=1 // pred_region
      %1870 = dma.done [#allocation3], 32
    $region49: #{tpu_custom_call.1} parent=1 // pred_fallthru
      _
    %1871 = vsyncpa [#allocation3], 1

</llo_original>
